<compile_context>
chip_gen: v6e
topology: v6e:2x2x1
jax: 0.10.0
libtpu: 0.0.40
codegen_flags: <defaults>
</compile_context>

<pallas_src>
import math

import jax
import jax.numpy as jnp
from jax import lax
from jax.experimental import pallas as pl
from jax.experimental.pallas import tpu as pltpu

GROUP = 100   # hard-coded group size from the module's .view(..., 100, ...) calls
PAD = 128     # padded group size -> one full 128-lane tile per group


def _full_attention1_kernel(q_ref, k_ref, v_ref, wk_ref, wvt_ref, o_ref):
    # One batch per grid step; all H heads processed here.
    H = q_ref.shape[1]
    Qn = q_ref.shape[2]
    D = q_ref.shape[3]
    Wp = k_ref.shape[2]
    G = Wp // PAD
    temp = 1.0 / math.sqrt(D)

    wk = wk_ref[...].astype(jnp.float32)    # [D, D]  (as-is: q @ wk == q @ W_k)
    wvt = wvt_ref[...].astype(jnp.float32)  # [D, D]  (W_v.T: acc @ wvt == acc @ W_v^T)

    # Mask for the (PAD - GROUP) zero-padded key positions in every 128-wide group.
    lane = lax.broadcasted_iota(jnp.int32, (Qn, Wp), 1)
    valid = (lane % PAD) < GROUP            # [Q, Wp] bool, same for all heads

    head_outs = []
    for h in range(H):
        q_h = q_ref[0, h]                   # [Q, D]   (input dtype)
        k_h = k_ref[0, h]                   # [Wp, D]
        v_h = v_ref[0, h]                   # [Wp, D]

        # Fold 1/sqrt(D) into q once; covers both softmax temperatures.
        q_s32 = q_h.astype(jnp.float32) * temp       # [Q, D] f32
        q_s = q_s32.astype(q_h.dtype)                # keep bf16 MXU feed if inputs are bf16

        # All-key scores in a single MXU matmul, then mask the padded lanes.
        s = lax.dot_general(q_s, k_h, (((1,), (1,)), ((), ())),
                            preferred_element_type=jnp.float32)      # [Q, Wp]
        s = jnp.where(valid, s, -1e30)

        # Hoisted W_k projection onto q:  q . (x W_k^T) == (q W_k) . x
        q_wk = jnp.dot(q_s32, wk, preferred_element_type=jnp.float32)  # [Q, D]

        # Online softmax over the group axis.
        m2 = None
        l2 = None
        acc = None
        for g in range(G):
            s_g = s[:, g * PAD:(g + 1) * PAD]                    # [Q, 128] lane-aligned
            m_g = jnp.max(s_g, axis=-1, keepdims=True)           # [Q, 1]
            e_g = jnp.exp(s_g - m_g)                             # [Q, 128]
            denom_g = jnp.sum(e_g, axis=-1, keepdims=True)       # [Q, 1]

            v_g = v_h[g * PAD:(g + 1) * PAD, :]                  # [128, D] sublane-aligned
            uq_g = jnp.dot(e_g.astype(v_h.dtype), v_g,
                           preferred_element_type=jnp.float32)   # [Q, D]
            queried_g = uq_g * pl.reciprocal(denom_g, approx=False)

            # Second-attention logit for this group (temp already folded into q_wk).
            l_g = jnp.sum(q_wk * queried_g, axis=-1, keepdims=True)   # [Q, 1]

            if g == 0:
                m2 = l_g
                l2 = jnp.ones_like(l_g)
                acc = queried_g
            else:
                m2_new = jnp.maximum(m2, l_g)
                alpha = jnp.exp(m2 - m2_new)
                p = jnp.exp(l_g - m2_new)
                l2 = alpha * l2 + p
                acc = alpha * acc + p * queried_g
                m2 = m2_new

        # Deferred W_v projection: (sum_g a_in_g * queried_g) @ W_v^T
        out_h = jnp.dot(acc * pl.reciprocal(l2, approx=False), wvt,
                        preferred_element_type=jnp.float32)       # [Q, D]
        head_outs.append(out_h)

    # Lane-dense store: one unmasked [Q, H*D] (=128-lane) slab per batch.
    o_ref[0] = jnp.concatenate(head_outs, axis=-1).astype(o_ref.dtype)


def full_attention1(queries, keys, values, wk, wv):
    """Pallas implementation of FullAttention1.forward (use_dropout=False)."""
    B, Qn, H, D = queries.shape
    W = keys.shape[1]
    assert W % GROUP == 0, "W (number of key positions) must be a multiple of 100"
    assert D == 32 and wk.shape == (32, 32) and wv.shape == (32, 32), \
        "Linear(32, 32) requires D == 32"
    G = W // GROUP
    Wp = G * PAD

    # Move head axis next to batch so (seq, D) are the tiled minor dims.
    q_t = jnp.transpose(queries, (0, 2, 1, 3))   # [B, H, Q, D]
    k_t = jnp.transpose(keys, (0, 2, 1, 3))      # [B, H, W, D]
    v_t = jnp.transpose(values, (0, 2, 1, 3))    # [B, H, W, D]

    # Pad each group of 100 key positions to 128 (zeros; masked in-kernel).
    def pad_groups(x):
        x = x.reshape(B, H, G, GROUP, D)
        x = jnp.pad(x, ((0, 0), (0, 0), (0, 0), (0, PAD - GROUP), (0, 0)))
        return x.reshape(B, H, Wp, D)

    k_p = pad_groups(k_t)
    v_p = pad_groups(v_t)
    wv_t = wv.T

    out = pl.pallas_call(
        _full_attention1_kernel,
        out_shape=jax.ShapeDtypeStruct((B, Qn, H * D), queries.dtype),
        grid_spec=pltpu.PrefetchScalarGridSpec(
            num_scalar_prefetch=0,
            grid=(B,),
            in_specs=[
                pl.BlockSpec((1, H, Qn, D), lambda b: (b, 0, 0, 0)),
                pl.BlockSpec((1, H, Wp, D), lambda b: (b, 0, 0, 0)),
                pl.BlockSpec((1, H, Wp, D), lambda b: (b, 0, 0, 0)),
                pl.BlockSpec((D, D), lambda b: (0, 0)),
                pl.BlockSpec((D, D), lambda b: (0, 0)),
            ],
            out_specs=pl.BlockSpec((1, Qn, H * D), lambda b: (b, 0, 0)),
        ),
        compiler_params=pltpu.CompilerParams(
            dimension_semantics=("parallel",)),
    )(q_t, k_p, v_p, wk, wv_t)

    # [B, Q, H*D] -> [B, Q, H, D]
    return out.reshape(B, Qn, H, D)


def full_attention1_ref(queries, keys, values, wk, wv):
    """Pure-JAX reference mirroring the PyTorch forward exactly."""
    B, Qn, H, D = queries.shape
    temp = 1.0 / math.sqrt(D)
    QK = jnp.einsum('bqhd,bwhd->bqwh', queries, keys)
    sQK = temp * QK.reshape(B, Qn, -1, GROUP, H)
    A = jax.nn.softmax(sQK, axis=3)
    v_sep = values.reshape(B, -1, GROUP, H, D)
    qv = jnp.einsum('bqwnh,bwnhd->bqwhd', A, v_sep)
    key_in = qv @ wk.T
    value_in = qv @ wv.T
    QK_in = jnp.einsum('bqhd,bqwhd->bqwh', queries, key_in)
    A_in = jax.nn.softmax(temp * QK_in, axis=2)
    return jnp.einsum('bqwh,bqwhd->bqhd', A_in, value_in)


if __name__ == "__main__":
    B, Qn, H, D = 2, 8, 4, 32
    W = 200  # 2 groups of 100 key positions

    key = jax.random.PRNGKey(0)
    kq, kk, kv, kwk, kwv = jax.random.split(key, 5)
    queries = jax.random.normal(kq, (B, Qn, H, D), dtype=jnp.float32)
    keys = jax.random.normal(kk, (B, W, H, D), dtype=jnp.float32)
    values = jax.random.normal(kv, (B, W, H, D), dtype=jnp.float32)
    # Deterministic synthetic weights for k_proj_in / v_proj_in (Linear(32, 32, bias=False))
    wk = jax.random.normal(kwk, (32, 32), dtype=jnp.float32) * 0.1
    wv = jax.random.normal(kwv, (32, 32), dtype=jnp.float32) * 0.1

    out = jax.block_until_ready(full_attention1(queries, keys, values, wk, wv))
    ref = jax.block_until_ready(full_attention1_ref(queries, keys, values, wk, wv))

    assert out.shape == (B, Qn, H, D)
    assert jnp.allclose(out, ref, rtol=1e-4, atol=1e-4), (
        f"max abs err = {jnp.max(jnp.abs(out - ref))}")
    print("KERNEL_OK")
</pallas_src>

<mosaic_0001>
module attributes {stable_mosaic.version = 11 : i64} {
  func.func @_full_attention1_kernel(%arg0: i32, %arg1: memref<1x4x8x32xf32, #tpu.memory_space<vmem>>, %arg2: memref<1x4x256x32xf32, #tpu.memory_space<vmem>>, %arg3: memref<1x4x256x32xf32, #tpu.memory_space<vmem>>, %arg4: memref<32x32xf32, #tpu.memory_space<vmem>>, %arg5: memref<32x32xf32, #tpu.memory_space<vmem>>, %arg6: memref<1x8x128xf32, #tpu.memory_space<vmem>>) attributes {dimension_semantics = [#tpu.dimension_semantics<parallel>], iteration_bounds = array<i64: 2>, scalar_prefetch = 0 : i64, scratch_operands = 0 : i64, tpu.core_type = #tpu.core_type<tc>, window_params = [{transform_indices = @transform_0, window_bounds = array<i64: 1, 4, 8, 32>}, {transform_indices = @transform_1, window_bounds = array<i64: 1, 4, 256, 32>}, {transform_indices = @transform_2, window_bounds = array<i64: 1, 4, 256, 32>}, {pipeline_mode = #tpu.pipeline_mode<synchronous>, transform_indices = @transform_3, window_bounds = array<i64: 32, 32>}, {pipeline_mode = #tpu.pipeline_mode<synchronous>, transform_indices = @transform_4, window_bounds = array<i64: 32, 32>}, {transform_indices = @transform_5, window_bounds = array<i64: 1, 8, 128>}]} {
    %c0 = arith.constant 0 : index
    %c0_0 = arith.constant 0 : index
    %0 = vector.load %arg4[%c0, %c0_0] : memref<32x32xf32, #tpu.memory_space<vmem>>, vector<32x32xf32>
    %c0_1 = arith.constant 0 : index
    %c0_2 = arith.constant 0 : index
    %1 = vector.load %arg5[%c0_1, %c0_2] : memref<32x32xf32, #tpu.memory_space<vmem>>, vector<32x32xf32>
    %2 = tpu.iota {dimensions = array<i32: 1>} : vector<8x256xi32>
    %c128_i32 = arith.constant 128 : i32
    %c0_i32 = arith.constant 0 : i32
    %3 = arith.cmpi eq, %c128_i32, %c0_i32 : i32
    %c1_i32 = arith.constant 1 : i32
    %4 = arith.select %3, %c1_i32, %c128_i32 : i32
    %5 = vector.broadcast %4 : i32 to vector<8x256xi32>
    %6 = arith.remsi %2, %5 : vector<8x256xi32>
    %c0_i32_3 = arith.constant 0 : i32
    %7 = vector.broadcast %c0_i32_3 : i32 to vector<8x256xi32>
    %8 = arith.cmpi ne, %6, %7 : vector<8x256xi32>
    %c0_i32_4 = arith.constant 0 : i32
    %9 = vector.broadcast %c0_i32_4 : i32 to vector<8x256xi32>
    %10 = arith.cmpi slt, %6, %9 : vector<8x256xi32>
    %c0_i32_5 = arith.constant 0 : i32
    %11 = arith.cmpi slt, %4, %c0_i32_5 : i32
    %12 = vector.broadcast %11 : i1 to vector<8x256xi1>
    %13 = vector.broadcast %12 : vector<8x256xi1> to vector<8x256xi1>
    %14 = arith.xori %10, %13 : vector<8x256xi1>
    %15 = arith.andi %14, %8 : vector<8x256xi1>
    %16 = vector.broadcast %4 : i32 to vector<8x256xi32>
    %17 = arith.addi %6, %16 : vector<8x256xi32>
    %18 = arith.select %15, %17, %6 : vector<8x256xi1>, vector<8x256xi32>
    %c100_i32 = arith.constant 100 : i32
    %19 = vector.broadcast %c100_i32 : i32 to vector<8x256xi32>
    %20 = arith.cmpi slt, %18, %19 : vector<8x256xi32>
    %c0_6 = arith.constant 0 : index
    %c0_7 = arith.constant 0 : index
    %c0_8 = arith.constant 0 : index
    %c0_9 = arith.constant 0 : index
    %21 = vector.load %arg1[%c0_6, %c0_7, %c0_8, %c0_9] : memref<1x4x8x32xf32, #tpu.memory_space<vmem>>, vector<1x1x8x32xf32>
    %22 = vector.shape_cast %21 : vector<1x1x8x32xf32> to vector<8x32xf32>
    %c0_10 = arith.constant 0 : index
    %c0_11 = arith.constant 0 : index
    %c0_12 = arith.constant 0 : index
    %c0_13 = arith.constant 0 : index
    %23 = vector.load %arg2[%c0_10, %c0_11, %c0_12, %c0_13] : memref<1x4x256x32xf32, #tpu.memory_space<vmem>>, vector<1x1x256x32xf32>
    %24 = vector.shape_cast %23 : vector<1x1x256x32xf32> to vector<256x32xf32>
    %c0_14 = arith.constant 0 : index
    %c0_15 = arith.constant 0 : index
    %c0_16 = arith.constant 0 : index
    %c0_17 = arith.constant 0 : index
    %25 = vector.load %arg3[%c0_14, %c0_15, %c0_16, %c0_17] : memref<1x4x256x32xf32, #tpu.memory_space<vmem>>, vector<1x1x256x32xf32>
    %26 = vector.shape_cast %25 : vector<1x1x256x32xf32> to vector<256x32xf32>
    %cst = arith.constant 0.176776692 : f32
    %27 = vector.broadcast %cst : f32 to vector<8x32xf32>
    %28 = arith.mulf %22, %27 : vector<8x32xf32>
    %cst_18 = arith.constant dense<0.000000e+00> : vector<8x256xf32>
    %29 = tpu.matmul %28, %24, %cst_18 {dimension_numbers = #tpu.dot_dimension_numbers<[1], [1], [0], [0], [0, 0, 1, 0], [], []>} : vector<8x32xf32>, vector<256x32xf32>, vector<8x256xf32> -> vector<8x256xf32>
    %cst_19 = arith.constant -1.000000e+30 : f32
    %30 = vector.broadcast %cst_19 : f32 to vector<8x256xf32>
    %31 = arith.select %20, %29, %30 : vector<8x256xi1>, vector<8x256xf32>
    %cst_20 = arith.constant dense<0.000000e+00> : vector<8x32xf32>
    %32 = tpu.matmul %28, %0, %cst_20 {dimension_numbers = #tpu.dot_dimension_numbers<[1], [0], [0], [1], [0, 0, 1, 1], [], []>} : vector<8x32xf32>, vector<32x32xf32>, vector<8x32xf32> -> vector<8x32xf32>
    %33 = vector.extract_strided_slice %31 {offsets = [0, 0], sizes = [8, 128], strides = [1, 1]} : vector<8x256xf32> to vector<8x128xf32>
    %cst_21 = arith.constant dense<0xFF800000> : vector<8xf32>
    %34 = vector.multi_reduction <maximumf>, %33, %cst_21 [1] : vector<8x128xf32> to vector<8xf32>
    %35 = vector.shape_cast %34 : vector<8xf32> to vector<8x1xf32>
    %36 = vector.broadcast %35 : vector<8x1xf32> to vector<8x128xf32>
    %37 = arith.subf %33, %36 : vector<8x128xf32>
    %38 = math.exp %37 : vector<8x128xf32>
    %cst_22 = arith.constant dense<0.000000e+00> : vector<8xf32>
    %39 = vector.multi_reduction <add>, %38, %cst_22 [1] : vector<8x128xf32> to vector<8xf32>
    %40 = vector.shape_cast %39 : vector<8xf32> to vector<8x1xf32>
    %41 = vector.extract_strided_slice %26 {offsets = [0, 0], sizes = [128, 32], strides = [1, 1]} : vector<256x32xf32> to vector<128x32xf32>
    %cst_23 = arith.constant dense<0.000000e+00> : vector<8x32xf32>
    %42 = tpu.matmul %38, %41, %cst_23 {dimension_numbers = #tpu.dot_dimension_numbers<[1], [0], [0], [1], [0, 0, 1, 1], [], []>} : vector<8x128xf32>, vector<128x32xf32>, vector<8x32xf32> -> vector<8x32xf32>
    %43 = tpu.reciprocal %40 : vector<8x1xf32> -> vector<8x1xf32>
    %44 = vector.broadcast %43 : vector<8x1xf32> to vector<8x32xf32>
    %45 = arith.mulf %42, %44 : vector<8x32xf32>
    %46 = arith.mulf %32, %45 : vector<8x32xf32>
    %cst_24 = arith.constant dense<0.000000e+00> : vector<8xf32>
    %47 = vector.multi_reduction <add>, %46, %cst_24 [1] : vector<8x32xf32> to vector<8xf32>
    %48 = vector.shape_cast %47 : vector<8xf32> to vector<8x1xf32>
    %cst_25 = arith.constant 1.000000e+00 : f32
    %49 = vector.broadcast %cst_25 : f32 to vector<8x1xf32>
    %50 = vector.extract_strided_slice %31 {offsets = [0, 128], sizes = [8, 128], strides = [1, 1]} : vector<8x256xf32> to vector<8x128xf32>
    %cst_26 = arith.constant dense<0xFF800000> : vector<8xf32>
    %51 = vector.multi_reduction <maximumf>, %50, %cst_26 [1] : vector<8x128xf32> to vector<8xf32>
    %52 = vector.shape_cast %51 : vector<8xf32> to vector<8x1xf32>
    %53 = vector.broadcast %52 : vector<8x1xf32> to vector<8x128xf32>
    %54 = arith.subf %50, %53 : vector<8x128xf32>
    %55 = math.exp %54 : vector<8x128xf32>
    %cst_27 = arith.constant dense<0.000000e+00> : vector<8xf32>
    %56 = vector.multi_reduction <add>, %55, %cst_27 [1] : vector<8x128xf32> to vector<8xf32>
    %57 = vector.shape_cast %56 : vector<8xf32> to vector<8x1xf32>
    %58 = vector.extract_strided_slice %26 {offsets = [128, 0], sizes = [128, 32], strides = [1, 1]} : vector<256x32xf32> to vector<128x32xf32>
    %cst_28 = arith.constant dense<0.000000e+00> : vector<8x32xf32>
    %59 = tpu.matmul %55, %58, %cst_28 {dimension_numbers = #tpu.dot_dimension_numbers<[1], [0], [0], [1], [0, 0, 1, 1], [], []>} : vector<8x128xf32>, vector<128x32xf32>, vector<8x32xf32> -> vector<8x32xf32>
    %60 = tpu.reciprocal %57 : vector<8x1xf32> -> vector<8x1xf32>
    %61 = vector.broadcast %60 : vector<8x1xf32> to vector<8x32xf32>
    %62 = arith.mulf %59, %61 : vector<8x32xf32>
    %63 = arith.mulf %32, %62 : vector<8x32xf32>
    %cst_29 = arith.constant dense<0.000000e+00> : vector<8xf32>
    %64 = vector.multi_reduction <add>, %63, %cst_29 [1] : vector<8x32xf32> to vector<8xf32>
    %65 = vector.shape_cast %64 : vector<8xf32> to vector<8x1xf32>
    %66 = arith.maximumf %48, %65 : vector<8x1xf32>
    %67 = arith.subf %48, %66 : vector<8x1xf32>
    %68 = math.exp %67 : vector<8x1xf32>
    %69 = arith.subf %65, %66 : vector<8x1xf32>
    %70 = math.exp %69 : vector<8x1xf32>
    %71 = arith.mulf %68, %49 : vector<8x1xf32>
    %72 = arith.addf %71, %70 : vector<8x1xf32>
    %73 = vector.broadcast %68 : vector<8x1xf32> to vector<8x32xf32>
    %74 = arith.mulf %73, %45 : vector<8x32xf32>
    %75 = vector.broadcast %70 : vector<8x1xf32> to vector<8x32xf32>
    %76 = arith.mulf %75, %62 : vector<8x32xf32>
    %77 = arith.addf %74, %76 : vector<8x32xf32>
    %78 = tpu.reciprocal %72 : vector<8x1xf32> -> vector<8x1xf32>
    %79 = vector.broadcast %78 : vector<8x1xf32> to vector<8x32xf32>
    %80 = arith.mulf %77, %79 : vector<8x32xf32>
    %cst_30 = arith.constant dense<0.000000e+00> : vector<8x32xf32>
    %81 = tpu.matmul %80, %1, %cst_30 {dimension_numbers = #tpu.dot_dimension_numbers<[1], [0], [0], [1], [0, 0, 1, 1], [], []>} : vector<8x32xf32>, vector<32x32xf32>, vector<8x32xf32> -> vector<8x32xf32>
    %c0_31 = arith.constant 0 : index
    %c1 = arith.constant 1 : index
    %c0_32 = arith.constant 0 : index
    %c0_33 = arith.constant 0 : index
    %82 = vector.load %arg1[%c0_31, %c1, %c0_32, %c0_33] : memref<1x4x8x32xf32, #tpu.memory_space<vmem>>, vector<1x1x8x32xf32>
    %83 = vector.shape_cast %82 : vector<1x1x8x32xf32> to vector<8x32xf32>
    %c0_34 = arith.constant 0 : index
    %c1_35 = arith.constant 1 : index
    %c0_36 = arith.constant 0 : index
    %c0_37 = arith.constant 0 : index
    %84 = vector.load %arg2[%c0_34, %c1_35, %c0_36, %c0_37] : memref<1x4x256x32xf32, #tpu.memory_space<vmem>>, vector<1x1x256x32xf32>
    %85 = vector.shape_cast %84 : vector<1x1x256x32xf32> to vector<256x32xf32>
    %c0_38 = arith.constant 0 : index
    %c1_39 = arith.constant 1 : index
    %c0_40 = arith.constant 0 : index
    %c0_41 = arith.constant 0 : index
    %86 = vector.load %arg3[%c0_38, %c1_39, %c0_40, %c0_41] : memref<1x4x256x32xf32, #tpu.memory_space<vmem>>, vector<1x1x256x32xf32>
    %87 = vector.shape_cast %86 : vector<1x1x256x32xf32> to vector<256x32xf32>
    %cst_42 = arith.constant 0.176776692 : f32
    %88 = vector.broadcast %cst_42 : f32 to vector<8x32xf32>
    %89 = arith.mulf %83, %88 : vector<8x32xf32>
    %cst_43 = arith.constant dense<0.000000e+00> : vector<8x256xf32>
    %90 = tpu.matmul %89, %85, %cst_43 {dimension_numbers = #tpu.dot_dimension_numbers<[1], [1], [0], [0], [0, 0, 1, 0], [], []>} : vector<8x32xf32>, vector<256x32xf32>, vector<8x256xf32> -> vector<8x256xf32>
    %cst_44 = arith.constant -1.000000e+30 : f32
    %91 = vector.broadcast %cst_44 : f32 to vector<8x256xf32>
    %92 = arith.select %20, %90, %91 : vector<8x256xi1>, vector<8x256xf32>
    %cst_45 = arith.constant dense<0.000000e+00> : vector<8x32xf32>
    %93 = tpu.matmul %89, %0, %cst_45 {dimension_numbers = #tpu.dot_dimension_numbers<[1], [0], [0], [1], [0, 0, 1, 1], [], []>} : vector<8x32xf32>, vector<32x32xf32>, vector<8x32xf32> -> vector<8x32xf32>
    %94 = vector.extract_strided_slice %92 {offsets = [0, 0], sizes = [8, 128], strides = [1, 1]} : vector<8x256xf32> to vector<8x128xf32>
    %cst_46 = arith.constant dense<0xFF800000> : vector<8xf32>
    %95 = vector.multi_reduction <maximumf>, %94, %cst_46 [1] : vector<8x128xf32> to vector<8xf32>
    %96 = vector.shape_cast %95 : vector<8xf32> to vector<8x1xf32>
    %97 = vector.broadcast %96 : vector<8x1xf32> to vector<8x128xf32>
    %98 = arith.subf %94, %97 : vector<8x128xf32>
    %99 = math.exp %98 : vector<8x128xf32>
    %cst_47 = arith.constant dense<0.000000e+00> : vector<8xf32>
    %100 = vector.multi_reduction <add>, %99, %cst_47 [1] : vector<8x128xf32> to vector<8xf32>
    %101 = vector.shape_cast %100 : vector<8xf32> to vector<8x1xf32>
    %102 = vector.extract_strided_slice %87 {offsets = [0, 0], sizes = [128, 32], strides = [1, 1]} : vector<256x32xf32> to vector<128x32xf32>
    %cst_48 = arith.constant dense<0.000000e+00> : vector<8x32xf32>
    %103 = tpu.matmul %99, %102, %cst_48 {dimension_numbers = #tpu.dot_dimension_numbers<[1], [0], [0], [1], [0, 0, 1, 1], [], []>} : vector<8x128xf32>, vector<128x32xf32>, vector<8x32xf32> -> vector<8x32xf32>
    %104 = tpu.reciprocal %101 : vector<8x1xf32> -> vector<8x1xf32>
    %105 = vector.broadcast %104 : vector<8x1xf32> to vector<8x32xf32>
    %106 = arith.mulf %103, %105 : vector<8x32xf32>
    %107 = arith.mulf %93, %106 : vector<8x32xf32>
    %cst_49 = arith.constant dense<0.000000e+00> : vector<8xf32>
    %108 = vector.multi_reduction <add>, %107, %cst_49 [1] : vector<8x32xf32> to vector<8xf32>
    %109 = vector.shape_cast %108 : vector<8xf32> to vector<8x1xf32>
    %cst_50 = arith.constant 1.000000e+00 : f32
    %110 = vector.broadcast %cst_50 : f32 to vector<8x1xf32>
    %111 = vector.extract_strided_slice %92 {offsets = [0, 128], sizes = [8, 128], strides = [1, 1]} : vector<8x256xf32> to vector<8x128xf32>
    %cst_51 = arith.constant dense<0xFF800000> : vector<8xf32>
    %112 = vector.multi_reduction <maximumf>, %111, %cst_51 [1] : vector<8x128xf32> to vector<8xf32>
    %113 = vector.shape_cast %112 : vector<8xf32> to vector<8x1xf32>
    %114 = vector.broadcast %113 : vector<8x1xf32> to vector<8x128xf32>
    %115 = arith.subf %111, %114 : vector<8x128xf32>
    %116 = math.exp %115 : vector<8x128xf32>
    %cst_52 = arith.constant dense<0.000000e+00> : vector<8xf32>
    %117 = vector.multi_reduction <add>, %116, %cst_52 [1] : vector<8x128xf32> to vector<8xf32>
    %118 = vector.shape_cast %117 : vector<8xf32> to vector<8x1xf32>
    %119 = vector.extract_strided_slice %87 {offsets = [128, 0], sizes = [128, 32], strides = [1, 1]} : vector<256x32xf32> to vector<128x32xf32>
    %cst_53 = arith.constant dense<0.000000e+00> : vector<8x32xf32>
    %120 = tpu.matmul %116, %119, %cst_53 {dimension_numbers = #tpu.dot_dimension_numbers<[1], [0], [0], [1], [0, 0, 1, 1], [], []>} : vector<8x128xf32>, vector<128x32xf32>, vector<8x32xf32> -> vector<8x32xf32>
    %121 = tpu.reciprocal %118 : vector<8x1xf32> -> vector<8x1xf32>
    %122 = vector.broadcast %121 : vector<8x1xf32> to vector<8x32xf32>
    %123 = arith.mulf %120, %122 : vector<8x32xf32>
    %124 = arith.mulf %93, %123 : vector<8x32xf32>
    %cst_54 = arith.constant dense<0.000000e+00> : vector<8xf32>
    %125 = vector.multi_reduction <add>, %124, %cst_54 [1] : vector<8x32xf32> to vector<8xf32>
    %126 = vector.shape_cast %125 : vector<8xf32> to vector<8x1xf32>
    %127 = arith.maximumf %109, %126 : vector<8x1xf32>
    %128 = arith.subf %109, %127 : vector<8x1xf32>
    %129 = math.exp %128 : vector<8x1xf32>
    %130 = arith.subf %126, %127 : vector<8x1xf32>
    %131 = math.exp %130 : vector<8x1xf32>
    %132 = arith.mulf %129, %110 : vector<8x1xf32>
    %133 = arith.addf %132, %131 : vector<8x1xf32>
    %134 = vector.broadcast %129 : vector<8x1xf32> to vector<8x32xf32>
    %135 = arith.mulf %134, %106 : vector<8x32xf32>
    %136 = vector.broadcast %131 : vector<8x1xf32> to vector<8x32xf32>
    %137 = arith.mulf %136, %123 : vector<8x32xf32>
    %138 = arith.addf %135, %137 : vector<8x32xf32>
    %139 = tpu.reciprocal %133 : vector<8x1xf32> -> vector<8x1xf32>
    %140 = vector.broadcast %139 : vector<8x1xf32> to vector<8x32xf32>
    %141 = arith.mulf %138, %140 : vector<8x32xf32>
    %cst_55 = arith.constant dense<0.000000e+00> : vector<8x32xf32>
    %142 = tpu.matmul %141, %1, %cst_55 {dimension_numbers = #tpu.dot_dimension_numbers<[1], [0], [0], [1], [0, 0, 1, 1], [], []>} : vector<8x32xf32>, vector<32x32xf32>, vector<8x32xf32> -> vector<8x32xf32>
    %c0_56 = arith.constant 0 : index
    %c2 = arith.constant 2 : index
    %c0_57 = arith.constant 0 : index
    %c0_58 = arith.constant 0 : index
    %143 = vector.load %arg1[%c0_56, %c2, %c0_57, %c0_58] : memref<1x4x8x32xf32, #tpu.memory_space<vmem>>, vector<1x1x8x32xf32>
    %144 = vector.shape_cast %143 : vector<1x1x8x32xf32> to vector<8x32xf32>
    %c0_59 = arith.constant 0 : index
    %c2_60 = arith.constant 2 : index
    %c0_61 = arith.constant 0 : index
    %c0_62 = arith.constant 0 : index
    %145 = vector.load %arg2[%c0_59, %c2_60, %c0_61, %c0_62] : memref<1x4x256x32xf32, #tpu.memory_space<vmem>>, vector<1x1x256x32xf32>
    %146 = vector.shape_cast %145 : vector<1x1x256x32xf32> to vector<256x32xf32>
    %c0_63 = arith.constant 0 : index
    %c2_64 = arith.constant 2 : index
    %c0_65 = arith.constant 0 : index
    %c0_66 = arith.constant 0 : index
    %147 = vector.load %arg3[%c0_63, %c2_64, %c0_65, %c0_66] : memref<1x4x256x32xf32, #tpu.memory_space<vmem>>, vector<1x1x256x32xf32>
    %148 = vector.shape_cast %147 : vector<1x1x256x32xf32> to vector<256x32xf32>
    %cst_67 = arith.constant 0.176776692 : f32
    %149 = vector.broadcast %cst_67 : f32 to vector<8x32xf32>
    %150 = arith.mulf %144, %149 : vector<8x32xf32>
    %cst_68 = arith.constant dense<0.000000e+00> : vector<8x256xf32>
    %151 = tpu.matmul %150, %146, %cst_68 {dimension_numbers = #tpu.dot_dimension_numbers<[1], [1], [0], [0], [0, 0, 1, 0], [], []>} : vector<8x32xf32>, vector<256x32xf32>, vector<8x256xf32> -> vector<8x256xf32>
    %cst_69 = arith.constant -1.000000e+30 : f32
    %152 = vector.broadcast %cst_69 : f32 to vector<8x256xf32>
    %153 = arith.select %20, %151, %152 : vector<8x256xi1>, vector<8x256xf32>
    %cst_70 = arith.constant dense<0.000000e+00> : vector<8x32xf32>
    %154 = tpu.matmul %150, %0, %cst_70 {dimension_numbers = #tpu.dot_dimension_numbers<[1], [0], [0], [1], [0, 0, 1, 1], [], []>} : vector<8x32xf32>, vector<32x32xf32>, vector<8x32xf32> -> vector<8x32xf32>
    %155 = vector.extract_strided_slice %153 {offsets = [0, 0], sizes = [8, 128], strides = [1, 1]} : vector<8x256xf32> to vector<8x128xf32>
    %cst_71 = arith.constant dense<0xFF800000> : vector<8xf32>
    %156 = vector.multi_reduction <maximumf>, %155, %cst_71 [1] : vector<8x128xf32> to vector<8xf32>
    %157 = vector.shape_cast %156 : vector<8xf32> to vector<8x1xf32>
    %158 = vector.broadcast %157 : vector<8x1xf32> to vector<8x128xf32>
    %159 = arith.subf %155, %158 : vector<8x128xf32>
    %160 = math.exp %159 : vector<8x128xf32>
    %cst_72 = arith.constant dense<0.000000e+00> : vector<8xf32>
    %161 = vector.multi_reduction <add>, %160, %cst_72 [1] : vector<8x128xf32> to vector<8xf32>
    %162 = vector.shape_cast %161 : vector<8xf32> to vector<8x1xf32>
    %163 = vector.extract_strided_slice %148 {offsets = [0, 0], sizes = [128, 32], strides = [1, 1]} : vector<256x32xf32> to vector<128x32xf32>
    %cst_73 = arith.constant dense<0.000000e+00> : vector<8x32xf32>
    %164 = tpu.matmul %160, %163, %cst_73 {dimension_numbers = #tpu.dot_dimension_numbers<[1], [0], [0], [1], [0, 0, 1, 1], [], []>} : vector<8x128xf32>, vector<128x32xf32>, vector<8x32xf32> -> vector<8x32xf32>
    %165 = tpu.reciprocal %162 : vector<8x1xf32> -> vector<8x1xf32>
    %166 = vector.broadcast %165 : vector<8x1xf32> to vector<8x32xf32>
    %167 = arith.mulf %164, %166 : vector<8x32xf32>
    %168 = arith.mulf %154, %167 : vector<8x32xf32>
    %cst_74 = arith.constant dense<0.000000e+00> : vector<8xf32>
    %169 = vector.multi_reduction <add>, %168, %cst_74 [1] : vector<8x32xf32> to vector<8xf32>
    %170 = vector.shape_cast %169 : vector<8xf32> to vector<8x1xf32>
    %cst_75 = arith.constant 1.000000e+00 : f32
    %171 = vector.broadcast %cst_75 : f32 to vector<8x1xf32>
    %172 = vector.extract_strided_slice %153 {offsets = [0, 128], sizes = [8, 128], strides = [1, 1]} : vector<8x256xf32> to vector<8x128xf32>
    %cst_76 = arith.constant dense<0xFF800000> : vector<8xf32>
    %173 = vector.multi_reduction <maximumf>, %172, %cst_76 [1] : vector<8x128xf32> to vector<8xf32>
    %174 = vector.shape_cast %173 : vector<8xf32> to vector<8x1xf32>
    %175 = vector.broadcast %174 : vector<8x1xf32> to vector<8x128xf32>
    %176 = arith.subf %172, %175 : vector<8x128xf32>
    %177 = math.exp %176 : vector<8x128xf32>
    %cst_77 = arith.constant dense<0.000000e+00> : vector<8xf32>
    %178 = vector.multi_reduction <add>, %177, %cst_77 [1] : vector<8x128xf32> to vector<8xf32>
    %179 = vector.shape_cast %178 : vector<8xf32> to vector<8x1xf32>
    %180 = vector.extract_strided_slice %148 {offsets = [128, 0], sizes = [128, 32], strides = [1, 1]} : vector<256x32xf32> to vector<128x32xf32>
    %cst_78 = arith.constant dense<0.000000e+00> : vector<8x32xf32>
    %181 = tpu.matmul %177, %180, %cst_78 {dimension_numbers = #tpu.dot_dimension_numbers<[1], [0], [0], [1], [0, 0, 1, 1], [], []>} : vector<8x128xf32>, vector<128x32xf32>, vector<8x32xf32> -> vector<8x32xf32>
    %182 = tpu.reciprocal %179 : vector<8x1xf32> -> vector<8x1xf32>
    %183 = vector.broadcast %182 : vector<8x1xf32> to vector<8x32xf32>
    %184 = arith.mulf %181, %183 : vector<8x32xf32>
    %185 = arith.mulf %154, %184 : vector<8x32xf32>
    %cst_79 = arith.constant dense<0.000000e+00> : vector<8xf32>
    %186 = vector.multi_reduction <add>, %185, %cst_79 [1] : vector<8x32xf32> to vector<8xf32>
    %187 = vector.shape_cast %186 : vector<8xf32> to vector<8x1xf32>
    %188 = arith.maximumf %170, %187 : vector<8x1xf32>
    %189 = arith.subf %170, %188 : vector<8x1xf32>
    %190 = math.exp %189 : vector<8x1xf32>
    %191 = arith.subf %187, %188 : vector<8x1xf32>
    %192 = math.exp %191 : vector<8x1xf32>
    %193 = arith.mulf %190, %171 : vector<8x1xf32>
    %194 = arith.addf %193, %192 : vector<8x1xf32>
    %195 = vector.broadcast %190 : vector<8x1xf32> to vector<8x32xf32>
    %196 = arith.mulf %195, %167 : vector<8x32xf32>
    %197 = vector.broadcast %192 : vector<8x1xf32> to vector<8x32xf32>
    %198 = arith.mulf %197, %184 : vector<8x32xf32>
    %199 = arith.addf %196, %198 : vector<8x32xf32>
    %200 = tpu.reciprocal %194 : vector<8x1xf32> -> vector<8x1xf32>
    %201 = vector.broadcast %200 : vector<8x1xf32> to vector<8x32xf32>
    %202 = arith.mulf %199, %201 : vector<8x32xf32>
    %cst_80 = arith.constant dense<0.000000e+00> : vector<8x32xf32>
    %203 = tpu.matmul %202, %1, %cst_80 {dimension_numbers = #tpu.dot_dimension_numbers<[1], [0], [0], [1], [0, 0, 1, 1], [], []>} : vector<8x32xf32>, vector<32x32xf32>, vector<8x32xf32> -> vector<8x32xf32>
    %c0_81 = arith.constant 0 : index
    %c3 = arith.constant 3 : index
    %c0_82 = arith.constant 0 : index
    %c0_83 = arith.constant 0 : index
    %204 = vector.load %arg1[%c0_81, %c3, %c0_82, %c0_83] : memref<1x4x8x32xf32, #tpu.memory_space<vmem>>, vector<1x1x8x32xf32>
    %205 = vector.shape_cast %204 : vector<1x1x8x32xf32> to vector<8x32xf32>
    %c0_84 = arith.constant 0 : index
    %c3_85 = arith.constant 3 : index
    %c0_86 = arith.constant 0 : index
    %c0_87 = arith.constant 0 : index
    %206 = vector.load %arg2[%c0_84, %c3_85, %c0_86, %c0_87] : memref<1x4x256x32xf32, #tpu.memory_space<vmem>>, vector<1x1x256x32xf32>
    %207 = vector.shape_cast %206 : vector<1x1x256x32xf32> to vector<256x32xf32>
    %c0_88 = arith.constant 0 : index
    %c3_89 = arith.constant 3 : index
    %c0_90 = arith.constant 0 : index
    %c0_91 = arith.constant 0 : index
    %208 = vector.load %arg3[%c0_88, %c3_89, %c0_90, %c0_91] : memref<1x4x256x32xf32, #tpu.memory_space<vmem>>, vector<1x1x256x32xf32>
    %209 = vector.shape_cast %208 : vector<1x1x256x32xf32> to vector<256x32xf32>
    %cst_92 = arith.constant 0.176776692 : f32
    %210 = vector.broadcast %cst_92 : f32 to vector<8x32xf32>
    %211 = arith.mulf %205, %210 : vector<8x32xf32>
    %cst_93 = arith.constant dense<0.000000e+00> : vector<8x256xf32>
    %212 = tpu.matmul %211, %207, %cst_93 {dimension_numbers = #tpu.dot_dimension_numbers<[1], [1], [0], [0], [0, 0, 1, 0], [], []>} : vector<8x32xf32>, vector<256x32xf32>, vector<8x256xf32> -> vector<8x256xf32>
    %cst_94 = arith.constant -1.000000e+30 : f32
    %213 = vector.broadcast %cst_94 : f32 to vector<8x256xf32>
    %214 = arith.select %20, %212, %213 : vector<8x256xi1>, vector<8x256xf32>
    %cst_95 = arith.constant dense<0.000000e+00> : vector<8x32xf32>
    %215 = tpu.matmul %211, %0, %cst_95 {dimension_numbers = #tpu.dot_dimension_numbers<[1], [0], [0], [1], [0, 0, 1, 1], [], []>} : vector<8x32xf32>, vector<32x32xf32>, vector<8x32xf32> -> vector<8x32xf32>
    %216 = vector.extract_strided_slice %214 {offsets = [0, 0], sizes = [8, 128], strides = [1, 1]} : vector<8x256xf32> to vector<8x128xf32>
    %cst_96 = arith.constant dense<0xFF800000> : vector<8xf32>
    %217 = vector.multi_reduction <maximumf>, %216, %cst_96 [1] : vector<8x128xf32> to vector<8xf32>
    %218 = vector.shape_cast %217 : vector<8xf32> to vector<8x1xf32>
    %219 = vector.broadcast %218 : vector<8x1xf32> to vector<8x128xf32>
    %220 = arith.subf %216, %219 : vector<8x128xf32>
    %221 = math.exp %220 : vector<8x128xf32>
    %cst_97 = arith.constant dense<0.000000e+00> : vector<8xf32>
    %222 = vector.multi_reduction <add>, %221, %cst_97 [1] : vector<8x128xf32> to vector<8xf32>
    %223 = vector.shape_cast %222 : vector<8xf32> to vector<8x1xf32>
    %224 = vector.extract_strided_slice %209 {offsets = [0, 0], sizes = [128, 32], strides = [1, 1]} : vector<256x32xf32> to vector<128x32xf32>
    %cst_98 = arith.constant dense<0.000000e+00> : vector<8x32xf32>
    %225 = tpu.matmul %221, %224, %cst_98 {dimension_numbers = #tpu.dot_dimension_numbers<[1], [0], [0], [1], [0, 0, 1, 1], [], []>} : vector<8x128xf32>, vector<128x32xf32>, vector<8x32xf32> -> vector<8x32xf32>
    %226 = tpu.reciprocal %223 : vector<8x1xf32> -> vector<8x1xf32>
    %227 = vector.broadcast %226 : vector<8x1xf32> to vector<8x32xf32>
    %228 = arith.mulf %225, %227 : vector<8x32xf32>
    %229 = arith.mulf %215, %228 : vector<8x32xf32>
    %cst_99 = arith.constant dense<0.000000e+00> : vector<8xf32>
    %230 = vector.multi_reduction <add>, %229, %cst_99 [1] : vector<8x32xf32> to vector<8xf32>
    %231 = vector.shape_cast %230 : vector<8xf32> to vector<8x1xf32>
    %cst_100 = arith.constant 1.000000e+00 : f32
    %232 = vector.broadcast %cst_100 : f32 to vector<8x1xf32>
    %233 = vector.extract_strided_slice %214 {offsets = [0, 128], sizes = [8, 128], strides = [1, 1]} : vector<8x256xf32> to vector<8x128xf32>
    %cst_101 = arith.constant dense<0xFF800000> : vector<8xf32>
    %234 = vector.multi_reduction <maximumf>, %233, %cst_101 [1] : vector<8x128xf32> to vector<8xf32>
    %235 = vector.shape_cast %234 : vector<8xf32> to vector<8x1xf32>
    %236 = vector.broadcast %235 : vector<8x1xf32> to vector<8x128xf32>
    %237 = arith.subf %233, %236 : vector<8x128xf32>
    %238 = math.exp %237 : vector<8x128xf32>
    %cst_102 = arith.constant dense<0.000000e+00> : vector<8xf32>
    %239 = vector.multi_reduction <add>, %238, %cst_102 [1] : vector<8x128xf32> to vector<8xf32>
    %240 = vector.shape_cast %239 : vector<8xf32> to vector<8x1xf32>
    %241 = vector.extract_strided_slice %209 {offsets = [128, 0], sizes = [128, 32], strides = [1, 1]} : vector<256x32xf32> to vector<128x32xf32>
    %cst_103 = arith.constant dense<0.000000e+00> : vector<8x32xf32>
    %242 = tpu.matmul %238, %241, %cst_103 {dimension_numbers = #tpu.dot_dimension_numbers<[1], [0], [0], [1], [0, 0, 1, 1], [], []>} : vector<8x128xf32>, vector<128x32xf32>, vector<8x32xf32> -> vector<8x32xf32>
    %243 = tpu.reciprocal %240 : vector<8x1xf32> -> vector<8x1xf32>
    %244 = vector.broadcast %243 : vector<8x1xf32> to vector<8x32xf32>
    %245 = arith.mulf %242, %244 : vector<8x32xf32>
    %246 = arith.mulf %215, %245 : vector<8x32xf32>
    %cst_104 = arith.constant dense<0.000000e+00> : vector<8xf32>
    %247 = vector.multi_reduction <add>, %246, %cst_104 [1] : vector<8x32xf32> to vector<8xf32>
    %248 = vector.shape_cast %247 : vector<8xf32> to vector<8x1xf32>
    %249 = arith.maximumf %231, %248 : vector<8x1xf32>
    %250 = arith.subf %231, %249 : vector<8x1xf32>
    %251 = math.exp %250 : vector<8x1xf32>
    %252 = arith.subf %248, %249 : vector<8x1xf32>
    %253 = math.exp %252 : vector<8x1xf32>
    %254 = arith.mulf %251, %232 : vector<8x1xf32>
    %255 = arith.addf %254, %253 : vector<8x1xf32>
    %256 = vector.broadcast %251 : vector<8x1xf32> to vector<8x32xf32>
    %257 = arith.mulf %256, %228 : vector<8x32xf32>
    %258 = vector.broadcast %253 : vector<8x1xf32> to vector<8x32xf32>
    %259 = arith.mulf %258, %245 : vector<8x32xf32>
    %260 = arith.addf %257, %259 : vector<8x32xf32>
    %261 = tpu.reciprocal %255 : vector<8x1xf32> -> vector<8x1xf32>
    %262 = vector.broadcast %261 : vector<8x1xf32> to vector<8x32xf32>
    %263 = arith.mulf %260, %262 : vector<8x32xf32>
    %cst_105 = arith.constant dense<0.000000e+00> : vector<8x32xf32>
    %264 = tpu.matmul %263, %1, %cst_105 {dimension_numbers = #tpu.dot_dimension_numbers<[1], [0], [0], [1], [0, 0, 1, 1], [], []>} : vector<8x32xf32>, vector<32x32xf32>, vector<8x32xf32> -> vector<8x32xf32>
    %265 = tpu.concatenate %81, %142, %203, %264 in 1 : vector<8x32xf32>, vector<8x32xf32>, vector<8x32xf32>, vector<8x32xf32> -> vector<8x128xf32>
    %c0_106 = arith.constant 0 : index
    %c0_107 = arith.constant 0 : index
    %c0_108 = arith.constant 0 : index
    %266 = vector.load %arg6[%c0_106, %c0_107, %c0_108] : memref<1x8x128xf32, #tpu.memory_space<vmem>>, vector<1x8x128xf32>
    %267 = vector.shape_cast %266 : vector<1x8x128xf32> to vector<8x128xf32>
    %268 = vector.shape_cast %265 : vector<8x128xf32> to vector<1x8x128xf32>
    tpu.vector_store %arg6[%c0_106, %c0_107, %c0_108], %268 {strides = array<i32>} : memref<1x8x128xf32, #tpu.memory_space<vmem>>, vector<1x8x128xf32>,
    return
  }
  func.func @transform_0(%arg0: i32) -> (i32, i32, i32, i32) {
    %c0_i32 = arith.constant 0 : i32
    %c0_i32_0 = arith.constant 0 : i32
    %c0_i32_1 = arith.constant 0 : i32
    %c0_i32_2 = arith.constant 0 : i32
    return %arg0, %c0_i32, %c0_i32_0, %c0_i32_1 : i32, i32, i32, i32
  }
  func.func @transform_1(%arg0: i32) -> (i32, i32, i32, i32) {
    %c0_i32 = arith.constant 0 : i32
    %c0_i32_0 = arith.constant 0 : i32
    %c0_i32_1 = arith.constant 0 : i32
    %c0_i32_2 = arith.constant 0 : i32
    return %arg0, %c0_i32, %c0_i32_0, %c0_i32_1 : i32, i32, i32, i32
  }
  func.func @transform_2(%arg0: i32) -> (i32, i32, i32, i32) {
    %c0_i32 = arith.constant 0 : i32
    %c0_i32_0 = arith.constant 0 : i32
    %c0_i32_1 = arith.constant 0 : i32
    %c0_i32_2 = arith.constant 0 : i32
    return %arg0, %c0_i32, %c0_i32_0, %c0_i32_1 : i32, i32, i32, i32
  }
  func.func @transform_3(%arg0: i32) -> (i32, i32) {
    %c0_i32 = arith.constant 0 : i32
    %c0_i32_0 = arith.constant 0 : i32
    %c0_i32_1 = arith.constant 0 : i32
    return %c0_i32, %c0_i32_0 : i32, i32
  }
  func.func @transform_4(%arg0: i32) -> (i32, i32) {
    %c0_i32 = arith.constant 0 : i32
    %c0_i32_0 = arith.constant 0 : i32
    %c0_i32_1 = arith.constant 0 : i32
    return %c0_i32, %c0_i32_0 : i32, i32
  }
  func.func @transform_5(%arg0: i32) -> (i32, i32, i32) {
    %c0_i32 = arith.constant 0 : i32
    %c0_i32_0 = arith.constant 0 : i32
    %c0_i32_1 = arith.constant 0 : i32
    return %arg0, %c0_i32, %c0_i32_0 : i32, i32, i32
  }
}

</mosaic_0001>

<llo_original>
// kernel: tpu_custom_call.1
$region0: #{tpu_custom_call.1}
  #allocation0 [shape = 'u32[]', space=smem, size = 0x4, offset = 0x4, fixed_abs, tag = 'smem constant byte address 0x4 - core index']
  #allocation1 [shape = 'u32[144,128]{1,0:T(1,128)}', space=vmem, size = 0x12000, scoped, tag = 'internal scratch']
  %s0 = inlined_call_operand.vmem [shape: f32[2,4,8,32], index: 0, kind: input, shape index: {}]
  %s1 = inlined_call_operand.vmem [shape: f32[2,4,256,32], index: 1, kind: input, shape index: {}]
  %s2 = inlined_call_operand.vmem [shape: f32[2,4,256,32], index: 2, kind: input, shape index: {}]
  %s3 = inlined_call_operand.vmem [shape: f32[32,32], index: 3, kind: input, shape index: {}]
  %s4 = inlined_call_operand.vmem [shape: f32[32,32], index: 4, kind: input, shape index: {}]
  %s5 = inlined_call_operand.hbm [shape: f32[2,8,128], index: 5, kind: output, shape index: {}]
  %s6 = sld [smem:[#allocation0]]
  $region53: #{tpu_custom_call.1} parent=0
    _
  %s8 = ssub.s32 1, %s6
  %s9 = scalar_select 0, %s8, %s6
  $region1: #{tpu_custom_call.1} parent=0
    #allocation2 [shape = 'u8[8192]{0}', space=vmem, size = 0x2000, scoped, tag = 'output window, operand 0']
    #allocation3 [shape = 's32[2]{0}', space=sflag, size = 0x8, scoped, tag = 'scoped memory for tpu_custom_call.1']
    %10 = vsyncpa [#allocation3], 0
    %s11 = scalar_lea.sflag [#allocation3], 1
    %12 = vsyncpa %s11, 0
    loop: start=0, step=1, limit=4
    $region2: #{tpu_custom_call.1} parent=1 // loop_pre_header
      _
    $region3: #{tpu_custom_call.1} parent=1 // loop_header
      %s14 = sphi 0, %s18
      %p15 = scmp.ge.s32.totalorder %s14, 4
      %s24 = sphi 0, %s26
      %s27 = sphi 0, %s24
      %s28 = sphi 0, %s27
      %s44 = sphi 0, %s28
      %s50 = sphi 0, %s52
      %s53 = sphi 0, %s50
      %s54 = sphi 0, %s53
      %s70 = sphi 0, %s54
      %s76 = sphi 0, %s78
      %s79 = sphi 0, %s76
      %s80 = sphi 0, %s79
      %s96 = sphi 0, %s80
      %s100 = sphi 0, %s100
      %s102 = sphi 0, %s100
      %s103 = sphi 0, %s102
      %s117 = sphi 0, %s103
      %s121 = sphi 0, %s121
      %s123 = sphi 0, %s121
      %s124 = sphi 0, %s123
      %s138 = sphi 0, %s124
      %s144 = sphi 0, %s146
      %s147 = sphi 0, %s144
      %s148 = sphi 0, %s147
      %s164 = sphi 0, %s148
    $region4: #{tpu_custom_call.1} parent=1 // loop_header_branch
      %17 = sbr.rel (%p15) target = $region8
    $region5: #{tpu_custom_call.1} parent=1 // loop_body
      %s19 = ssub.s32 %s14, 1
      %s20 = ssub.s32 %s14, 2
      %s21 = sadd.s32 %s14, 1
      %s22 = ssub.s32 %s14, %s21
      %p23 = scmp.eq.s32.totalorder %s22, 0
      %s25 = sadd.s32 %s24, 1
      %s26 = scalar_select %p23, %s24, %s25
      %p29 = pneg %p23
      %p30 = scmp.eq.s32.totalorder %s14, 1
      %p31 = por %p29, %p30
      %p32 = scmp.ne.s32.totalorder %s24, %s27
      %p33 = scmp.eq.s32.totalorder %s14, 0
      %p34 = por %p32, %p33
      %p35 = scmp.ne.s32.totalorder %s24, %s27
      %p36 = scmp.eq.s32.totalorder %s19, 1
      %p37 = por %p35, %p36
      %p38 = scmp.ne.s32.totalorder %s27, %s28
      %p39 = scmp.eq.s32.totalorder %s19, 0
      %p40 = por %p38, %p39
      %p41 = scmp.ne.s32.totalorder %s27, %s28
      %p42 = scmp.eq.s32.totalorder %s20, 1
      %p43 = por %p41, %p42
      %p45 = scmp.ne.s32.totalorder %s28, %s44
      %p46 = scmp.eq.s32.totalorder %s20, 0
      %p47 = por %p45, %p46
      %s48 = ssub.s32 %s14, %s21
      %p49 = scmp.eq.s32.totalorder %s48, 0
      %s51 = sadd.s32 %s50, 1
      %s52 = scalar_select %p49, %s50, %s51
      %p55 = pneg %p49
      %p56 = scmp.eq.s32.totalorder %s14, 1
      %p57 = por %p55, %p56
      %p58 = scmp.ne.s32.totalorder %s50, %s53
      %p59 = scmp.eq.s32.totalorder %s14, 0
      %p60 = por %p58, %p59
      %p61 = scmp.ne.s32.totalorder %s50, %s53
      %p62 = scmp.eq.s32.totalorder %s19, 1
      %p63 = por %p61, %p62
      %p64 = scmp.ne.s32.totalorder %s53, %s54
      %p65 = scmp.eq.s32.totalorder %s19, 0
      %p66 = por %p64, %p65
      %p67 = scmp.ne.s32.totalorder %s53, %s54
      %p68 = scmp.eq.s32.totalorder %s20, 1
      %p69 = por %p67, %p68
      %p71 = scmp.ne.s32.totalorder %s54, %s70
      %p72 = scmp.eq.s32.totalorder %s20, 0
      %p73 = por %p71, %p72
      %s74 = ssub.s32 %s14, %s21
      %p75 = scmp.eq.s32.totalorder %s74, 0
      %s77 = sadd.s32 %s76, 1
      %s78 = scalar_select %p75, %s76, %s77
      %p81 = pneg %p75
      %p82 = scmp.eq.s32.totalorder %s14, 1
      %p83 = por %p81, %p82
      %p84 = scmp.ne.s32.totalorder %s76, %s79
      %p85 = scmp.eq.s32.totalorder %s14, 0
      %p86 = por %p84, %p85
      %p87 = scmp.ne.s32.totalorder %s76, %s79
      %p88 = scmp.eq.s32.totalorder %s19, 1
      %p89 = por %p87, %p88
      %p90 = scmp.ne.s32.totalorder %s79, %s80
      %p91 = scmp.eq.s32.totalorder %s19, 0
      %p92 = por %p90, %p91
      %p93 = scmp.ne.s32.totalorder %s79, %s80
      %p94 = scmp.eq.s32.totalorder %s20, 1
      %p95 = por %p93, %p94
      %p97 = scmp.ne.s32.totalorder %s80, %s96
      %p98 = scmp.eq.s32.totalorder %s20, 0
      %p99 = por %p97, %p98
      %s101 = sadd.s32 %s100, 1
      %p104 = scmp.eq.s32.totalorder %s14, 1
      %p105 = scmp.ne.s32.totalorder %s100, %s102
      %p106 = scmp.eq.s32.totalorder %s14, 0
      %p107 = por %p105, %p106
      %p108 = scmp.ne.s32.totalorder %s100, %s102
      %p109 = scmp.eq.s32.totalorder %s19, 1
      %p110 = por %p108, %p109
      %p111 = scmp.ne.s32.totalorder %s102, %s103
      %p112 = scmp.eq.s32.totalorder %s19, 0
      %p113 = por %p111, %p112
      %p114 = scmp.ne.s32.totalorder %s102, %s103
      %p115 = scmp.eq.s32.totalorder %s20, 1
      %p116 = por %p114, %p115
      %p118 = scmp.ne.s32.totalorder %s103, %s117
      %p119 = scmp.eq.s32.totalorder %s20, 0
      %p120 = por %p118, %p119
      %s122 = sadd.s32 %s121, 1
      %p125 = scmp.eq.s32.totalorder %s14, 1
      %p126 = scmp.ne.s32.totalorder %s121, %s123
      %p127 = scmp.eq.s32.totalorder %s14, 0
      %p128 = por %p126, %p127
      %p129 = scmp.ne.s32.totalorder %s121, %s123
      %p130 = scmp.eq.s32.totalorder %s19, 1
      %p131 = por %p129, %p130
      %p132 = scmp.ne.s32.totalorder %s123, %s124
      %p133 = scmp.eq.s32.totalorder %s19, 0
      %p134 = por %p132, %p133
      %p135 = scmp.ne.s32.totalorder %s123, %s124
      %p136 = scmp.eq.s32.totalorder %s20, 1
      %p137 = por %p135, %p136
      %p139 = scmp.ne.s32.totalorder %s124, %s138
      %p140 = scmp.eq.s32.totalorder %s20, 0
      %p141 = por %p139, %p140
      %s142 = ssub.s32 %s14, %s21
      %p143 = scmp.eq.s32.totalorder %s142, 0
      %s145 = sadd.s32 %s144, 1
      %s146 = scalar_select %p143, %s144, %s145
      %p149 = pneg %p143
      %p150 = scmp.eq.s32.totalorder %s14, 1
      %p151 = por %p149, %p150
      %p152 = scmp.ne.s32.totalorder %s144, %s147
      %p153 = scmp.eq.s32.totalorder %s14, 0
      %p154 = por %p152, %p153
      %p155 = scmp.ne.s32.totalorder %s144, %s147
      %p156 = scmp.eq.s32.totalorder %s19, 1
      %p157 = por %p155, %p156
      %p158 = scmp.ne.s32.totalorder %s147, %s148
      %p159 = scmp.eq.s32.totalorder %s19, 0
      %p160 = por %p158, %p159
      %p161 = scmp.ne.s32.totalorder %s147, %s148
      %p162 = scmp.eq.s32.totalorder %s20, 1
      %p163 = por %p161, %p162
      %p165 = scmp.ne.s32.totalorder %s148, %s164
      %p166 = scmp.eq.s32.totalorder %s20, 0
      %p167 = por %p165, %p166
      %p168 = scmp.le.s32.totalorder 1, %s14
      %p169 = scmp.lt.s32.totalorder %s14, 3
      %p170 = pnand %p168, %p169
      %p171 = pneg %p170
      // Predicated region
      $region9: #{tpu_custom_call.1} parent=5 // pred_check
        _
      $region10: #{tpu_custom_call.1} parent=5 // pred_check_branch
        %173 = sbr.rel (%p170) target = $region12
      $region11: #{tpu_custom_call.1} parent=5 // pred_region
        %s174 = ssub.s32 %s14, 1
        // Predicated region
        $region13: #{tpu_custom_call.1} parent=11 // pred_check
          %p175 = pneg %p113
        $region14: #{tpu_custom_call.1} parent=11 // pred_check_branch
          %177 = sbr.rel (%p175) target = $region16
        $region15: #{tpu_custom_call.1} parent=11 // pred_region
          _
        $region16: #{tpu_custom_call.1} parent=11 // pred_fallthru
          _
        // Predicated region
        $region17: #{tpu_custom_call.1} parent=11 // pred_check
          %p178 = pneg %p134
        $region18: #{tpu_custom_call.1} parent=11 // pred_check_branch
          %180 = sbr.rel (%p178) target = $region20
        $region19: #{tpu_custom_call.1} parent=11 // pred_region
          _
        $region20: #{tpu_custom_call.1} parent=11 // pred_fallthru
          _
      $region12: #{tpu_custom_call.1} parent=5 // pred_fallthru
        _
      %p181 = scmp.lt.s32.totalorder %s14, 2
      // Predicated region
      $region21: #{tpu_custom_call.1} parent=5 // pred_check
        %p182 = pneg %p181
      $region22: #{tpu_custom_call.1} parent=5 // pred_check_branch
        %184 = sbr.rel (%p182) target = $region24
      $region23: #{tpu_custom_call.1} parent=5 // pred_region
        // Predicated region
        $region25: #{tpu_custom_call.1} parent=23 // pred_check
          %p185 = pneg %p34
        $region26: #{tpu_custom_call.1} parent=23 // pred_check_branch
          %187 = sbr.rel (%p185) target = $region28
        $region27: #{tpu_custom_call.1} parent=23 // pred_region
          %p188 = scmp.lt.s32.totalorder %s14, 1
          %s189 = scalar_select %p188, %s14, 1
          %s190 = smul.addr %s189, 4
          %s191 = smul.addr %s190, 8
          %s192 = scalar_lea.vmem %s0, %s191
        $region28: #{tpu_custom_call.1} parent=23 // pred_fallthru
          _
        // Predicated region
        $region29: #{tpu_custom_call.1} parent=23 // pred_check
          %p193 = pneg %p60
        $region30: #{tpu_custom_call.1} parent=23 // pred_check_branch
          %195 = sbr.rel (%p193) target = $region32
        $region31: #{tpu_custom_call.1} parent=23 // pred_region
          %p196 = scmp.lt.s32.totalorder %s14, 1
          %s197 = scalar_select %p196, %s14, 1
          %s198 = smul.addr %s197, 128
          %s199 = smul.addr %s198, 8
          %s200 = scalar_lea.vmem %s1, %s199
        $region32: #{tpu_custom_call.1} parent=23 // pred_fallthru
          _
        // Predicated region
        $region33: #{tpu_custom_call.1} parent=23 // pred_check
          %p201 = pneg %p86
        $region34: #{tpu_custom_call.1} parent=23 // pred_check_branch
          %203 = sbr.rel (%p201) target = $region36
        $region35: #{tpu_custom_call.1} parent=23 // pred_region
          %p204 = scmp.lt.s32.totalorder %s14, 1
          %s205 = scalar_select %p204, %s14, 1
          %s206 = smul.addr %s205, 128
          %s207 = smul.addr %s206, 8
          %s208 = scalar_lea.vmem %s2, %s207
        $region36: #{tpu_custom_call.1} parent=23 // pred_fallthru
          _
      $region24: #{tpu_custom_call.1} parent=5 // pred_fallthru
        _
      %p209 = scmp.le.s32.totalorder 1, %s14
      %p210 = scmp.lt.s32.totalorder %s14, 3
      %p211 = pnand %p209, %p210
      %p212 = pneg %p211
      // Predicated region
      $region37: #{tpu_custom_call.1} parent=5 // pred_check
        _
      $region38: #{tpu_custom_call.1} parent=5 // pred_check_branch
        %214 = sbr.rel (%p211) target = $region40
      $region39: #{tpu_custom_call.1} parent=5 // pred_region
        %s215 = ssub.s32 %s14, 1
        %p216 = scmp.lt.s32.totalorder %s19, 1
        %s217 = scalar_select %p216, %s19, 1
        %s218 = smul.addr %s217, 4
        %s219 = smul.addr %s218, 8
        %s220 = scalar_lea.vmem %s0, %s219
        %p221 = pneg %p40
        %p222 = pneg %p37
        %p223 = scmp.lt.s32.totalorder %s19, 1
        %s224 = scalar_select %p223, %s19, 1
        %s225 = smul.addr %s224, 128
        %s226 = smul.addr %s225, 8
        %s227 = scalar_lea.vmem %s1, %s226
        %p228 = pneg %p66
        %p229 = pneg %p63
        %p230 = scmp.lt.s32.totalorder %s19, 1
        %s231 = scalar_select %p230, %s19, 1
        %s232 = smul.addr %s231, 128
        %s233 = smul.addr %s232, 8
        %s234 = scalar_lea.vmem %s2, %s233
        %p235 = pneg %p92
        %p236 = pneg %p89
        %p237 = pneg %p113
        %p238 = pneg %p110
        %p239 = pneg %p134
        %p240 = pneg %p131
        %p241 = pneg %p160
        %p242 = pneg %p157
        %s243 = sand.u32 %s147, 1
        %s244 = scalar_lea.sflag [#allocation3], %s243
        %s245 = sand.u32 %s147, 1
        %s246 = smul.addr %s245, 8
        %s247 = scalar_lea.vmem [#allocation2], %s246
        %p248 = scmp.lt.s32.totalorder %s19, 1
        %s249 = scalar_select %p248, %s19, 1
        %s250 = smul.addr %s249, 4
        %s251 = smul.addr %s250, 8
        %s252 = scalar_lea.vmem %s0, %s251
        %p253 = scmp.lt.s32.totalorder %s19, 1
        %s254 = scalar_select %p253, %s19, 1
        %s255 = smul.addr %s254, 128
        %s256 = smul.addr %s255, 8
        %s257 = scalar_lea.vmem %s1, %s256
        %p258 = scmp.lt.s32.totalorder %s19, 1
        %s259 = scalar_select %p258, %s19, 1
        %s260 = smul.addr %s259, 128
        %s261 = smul.addr %s260, 8
        %s262 = scalar_lea.vmem %s2, %s261
        %v263 = vld [vmem:[%s3] sm:$0xff]
        %v264 = vld [vmem:[%s3 + $0x8] sm:$0xff]
        %v265 = vld [vmem:[%s3 + $0x10] sm:$0xff]
        %v266 = vld [vmem:[%s3 + $0x18] sm:$0xff]
        %v267 = vld [vmem:[%s4] sm:$0xff]
        %v268 = vld [vmem:[%s4 + $0x8] sm:$0xff]
        %v269 = vld [vmem:[%s4 + $0x10] sm:$0xff]
        %v270 = vld [vmem:[%s4 + $0x18] sm:$0xff]
        %v271 = vlaneseq
        %v272 = vand.u32 %v271, 127
        %v273 = vadd.s32 %v272, 128
        %vm274 = vcmp.lt.s32.totalorder %v272, 0
        %v275 = vsub.s32 0, %v272
        %v276 = vsel %vm274, %v275, %v272
        %v277 = vshrl.u32 %v276, 7
        %v278 = vand.u32 %v276, 127
        %v279 = vsub.s32 0, %v278
        %v280 = vsel %vm274, %v279, %v278
        %vm281 = vcmp.lt.s32.totalorder %v273, 0
        %v282 = vsub.s32 0, %v273
        %v283 = vsel %vm281, %v282, %v273
        %v284 = vshrl.u32 %v283, 7
        %v285 = vand.u32 %v283, 127
        %v286 = vsub.s32 0, %v285
        %v287 = vsel %vm281, %v286, %v285
        %vm288 = vcmp.ne.s32.totalorder %v280, 0
        %vm289 = vcmp.ne.s32.totalorder %v287, 0
        %vm290 = vcmp.lt.s32.totalorder %v280, 0
        %vm291 = vcmp.lt.s32.totalorder %v287, 0
        %vm292 = vmand %vm290, %vm288
        %vm293 = vmand %vm291, %vm289
        %v294 = vadd.s32 %v280, 128
        %v295 = vadd.s32 %v287, 128
        %v296 = vsel %vm292, %v294, %v280
        %v297 = vsel %vm293, %v295, %v287
        %vm298 = vcmp.lt.s32.totalorder %v296, 100
        %vm299 = vcmp.lt.s32.totalorder %v297, 100
        %v300 = vld [vmem:[%s252] sm:$0xff]
        %v301 = vld [vmem:[%s257] sm:$0xff]
        %v302 = vld [vmem:[%s257 + $0x8] sm:$0xff]
        %v303 = vld [vmem:[%s257 + $0x10] sm:$0xff]
        %v304 = vld [vmem:[%s257 + $0x18] sm:$0xff]
        %v305 = vld [vmem:[%s257 + $0x20] sm:$0xff]
        %v306 = vld [vmem:[%s257 + $0x28] sm:$0xff]
        %v307 = vld [vmem:[%s257 + $0x30] sm:$0xff]
        %v308 = vld [vmem:[%s257 + $0x38] sm:$0xff]
        %v309 = vld [vmem:[%s257 + $0x40] sm:$0xff]
        %v310 = vld [vmem:[%s257 + $0x48] sm:$0xff]
        %v311 = vld [vmem:[%s257 + $0x50] sm:$0xff]
        %v312 = vld [vmem:[%s257 + $0x58] sm:$0xff]
        %v313 = vld [vmem:[%s257 + $0x60] sm:$0xff]
        %v314 = vld [vmem:[%s257 + $0x68] sm:$0xff]
        %v315 = vld [vmem:[%s257 + $0x70] sm:$0xff]
        %v316 = vld [vmem:[%s257 + $0x78] sm:$0xff]
        %v317 = vld [vmem:[%s257 + $0x80] sm:$0xff]
        %v318 = vld [vmem:[%s257 + $0x88] sm:$0xff]
        %v319 = vld [vmem:[%s257 + $0x90] sm:$0xff]
        %v320 = vld [vmem:[%s257 + $0x98] sm:$0xff]
        %v321 = vld [vmem:[%s257 + $0xa0] sm:$0xff]
        %v322 = vld [vmem:[%s257 + $0xa8] sm:$0xff]
        %v323 = vld [vmem:[%s257 + $0xb0] sm:$0xff]
        %v324 = vld [vmem:[%s257 + $0xb8] sm:$0xff]
        %v325 = vld [vmem:[%s257 + $0xc0] sm:$0xff]
        %v326 = vld [vmem:[%s257 + $0xc8] sm:$0xff]
        %v327 = vld [vmem:[%s257 + $0xd0] sm:$0xff]
        %v328 = vld [vmem:[%s257 + $0xd8] sm:$0xff]
        %v329 = vld [vmem:[%s257 + $0xe0] sm:$0xff]
        %v330 = vld [vmem:[%s257 + $0xe8] sm:$0xff]
        %v331 = vld [vmem:[%s257 + $0xf0] sm:$0xff]
        %v332 = vld [vmem:[%s257 + $0xf8] sm:$0xff]
        %v333 = vld [vmem:[%s262] sm:$0xff]
        %v334 = vld [vmem:[%s262 + $0x8] sm:$0xff]
        %v335 = vld [vmem:[%s262 + $0x10] sm:$0xff]
        %v336 = vld [vmem:[%s262 + $0x18] sm:$0xff]
        %v337 = vld [vmem:[%s262 + $0x20] sm:$0xff]
        %v338 = vld [vmem:[%s262 + $0x28] sm:$0xff]
        %v339 = vld [vmem:[%s262 + $0x30] sm:$0xff]
        %v340 = vld [vmem:[%s262 + $0x38] sm:$0xff]
        %v341 = vld [vmem:[%s262 + $0x40] sm:$0xff]
        %v342 = vld [vmem:[%s262 + $0x48] sm:$0xff]
        %v343 = vld [vmem:[%s262 + $0x50] sm:$0xff]
        %v344 = vld [vmem:[%s262 + $0x58] sm:$0xff]
        %v345 = vld [vmem:[%s262 + $0x60] sm:$0xff]
        %v346 = vld [vmem:[%s262 + $0x68] sm:$0xff]
        %v347 = vld [vmem:[%s262 + $0x70] sm:$0xff]
        %v348 = vld [vmem:[%s262 + $0x78] sm:$0xff]
        %v349 = vld [vmem:[%s262 + $0x80] sm:$0xff]
        %v350 = vld [vmem:[%s262 + $0x88] sm:$0xff]
        %v351 = vld [vmem:[%s262 + $0x90] sm:$0xff]
        %v352 = vld [vmem:[%s262 + $0x98] sm:$0xff]
        %v353 = vld [vmem:[%s262 + $0xa0] sm:$0xff]
        %v354 = vld [vmem:[%s262 + $0xa8] sm:$0xff]
        %v355 = vld [vmem:[%s262 + $0xb0] sm:$0xff]
        %v356 = vld [vmem:[%s262 + $0xb8] sm:$0xff]
        %v357 = vld [vmem:[%s262 + $0xc0] sm:$0xff]
        %v358 = vld [vmem:[%s262 + $0xc8] sm:$0xff]
        %v359 = vld [vmem:[%s262 + $0xd0] sm:$0xff]
        %v360 = vld [vmem:[%s262 + $0xd8] sm:$0xff]
        %v361 = vld [vmem:[%s262 + $0xe0] sm:$0xff]
        %v362 = vld [vmem:[%s262 + $0xe8] sm:$0xff]
        %v363 = vld [vmem:[%s262 + $0xf0] sm:$0xff]
        %v364 = vld [vmem:[%s262 + $0xf8] sm:$0xff]
        %v365 = vmul.f32 %v300, 0.17677669
        %vm366 = vcmask 261120
        %v368 = vsel %vm366, %v365, 0
        %v371 = vsel %vm366, %v301, 0
        %v374 = vsel %vm366, %v302, 0
        %v377 = vsel %vm366, %v303, 0
        %v380 = vsel %vm366, %v304, 0
        %v383 = vsel %vm366, %v305, 0
        %v386 = vsel %vm366, %v306, 0
        %v389 = vsel %vm366, %v307, 0
        %v392 = vsel %vm366, %v308, 0
        %v395 = vsel %vm366, %v309, 0
        %v398 = vsel %vm366, %v310, 0
        %v401 = vsel %vm366, %v311, 0
        %v404 = vsel %vm366, %v312, 0
        %v407 = vsel %vm366, %v313, 0
        %v410 = vsel %vm366, %v314, 0
        %v413 = vsel %vm366, %v315, 0
        %v416 = vsel %vm366, %v316, 0
        %v419 = vsel %vm366, %v317, 0
        %v422 = vsel %vm366, %v318, 0
        %v425 = vsel %vm366, %v319, 0
        %v428 = vsel %vm366, %v320, 0
        %v431 = vsel %vm366, %v321, 0
        %v434 = vsel %vm366, %v322, 0
        %v437 = vsel %vm366, %v323, 0
        %v440 = vsel %vm366, %v324, 0
        %v443 = vsel %vm366, %v325, 0
        %v446 = vsel %vm366, %v326, 0
        %v449 = vsel %vm366, %v327, 0
        %v452 = vsel %vm366, %v328, 0
        %v455 = vsel %vm366, %v329, 0
        %v458 = vsel %vm366, %v330, 0
        %v461 = vsel %vm366, %v331, 0
        %v464 = vsel %vm366, %v332, 0
        %466 = vmatprep.subr.mxu0 0.0
        %467 = vmatpush1.xpose.msra.mxu0 %v416
        %468 = vmatprep.subr.mxu0 0.0
        %469 = vmatpush1.xpose.msra.mxu0 %v413
        %470 = vmatprep.subr.mxu0 0.0
        %471 = vmatpush1.xpose.msra.mxu0 %v410
        %472 = vmatprep.subr.mxu0 0.0
        %473 = vmatpush1.xpose.msra.mxu0 %v407
        %474 = vmatprep.subr.mxu0 0.0
        %475 = vmatpush1.xpose.msra.mxu0 %v404
        %476 = vmatprep.subr.mxu0 0.0
        %477 = vmatpush1.xpose.msra.mxu0 %v401
        %478 = vmatprep.subr.mxu0 0.0
        %479 = vmatpush1.xpose.msra.mxu0 %v398
        %480 = vmatprep.subr.mxu0 0.0
        %481 = vmatpush1.xpose.msra.mxu0 %v395
        %482 = vmatprep.subr.mxu0 0.0
        %483 = vmatpush1.xpose.msra.mxu0 %v392
        %484 = vmatprep.subr.mxu0 0.0
        %485 = vmatpush1.xpose.msra.mxu0 %v389
        %486 = vmatprep.subr.mxu0 0.0
        %487 = vmatpush1.xpose.msra.mxu0 %v386
        %488 = vmatprep.subr.mxu0 0.0
        %489 = vmatpush1.xpose.msra.mxu0 %v383
        %490 = vmatprep.subr.mxu0 0.0
        %491 = vmatpush1.xpose.msra.mxu0 %v380
        %492 = vmatprep.subr.mxu0 0.0
        %493 = vmatpush1.xpose.msra.mxu0 %v377
        %494 = vmatprep.subr.mxu0 0.0
        %495 = vmatpush1.xpose.msra.mxu0 %v374
        %496 = vmatprep.subr.mxu0 0.0
        %497 = vmatpush1.xpose.msra.mxu0 %v371
        %498 = vmatprep.subr.mxu0 0.0
        %499 = vmatpush2.xpose.msra.mxu0 %v464
        %500 = vmatprep.subr.mxu0 0.0
        %501 = vmatpush2.xpose.msra.mxu0 %v461
        %502 = vmatprep.subr.mxu0 0.0
        %503 = vmatpush2.xpose.msra.mxu0 %v458
        %504 = vmatprep.subr.mxu0 0.0
        %505 = vmatpush2.xpose.msra.mxu0 %v455
        %506 = vmatprep.subr.mxu0 0.0
        %507 = vmatpush2.xpose.msra.mxu0 %v452
        %508 = vmatprep.subr.mxu0 0.0
        %509 = vmatpush2.xpose.msra.mxu0 %v449
        %510 = vmatprep.subr.mxu0 0.0
        %511 = vmatpush2.xpose.msra.mxu0 %v446
        %512 = vmatprep.subr.mxu0 0.0
        %513 = vmatpush2.xpose.msra.mxu0 %v443
        %514 = vmatprep.subr.mxu0 0.0
        %515 = vmatpush2.xpose.msra.mxu0 %v440
        %516 = vmatprep.subr.mxu0 0.0
        %517 = vmatpush2.xpose.msra.mxu0 %v437
        %518 = vmatprep.subr.mxu0 0.0
        %519 = vmatpush2.xpose.msra.mxu0 %v434
        %520 = vmatprep.subr.mxu0 0.0
        %521 = vmatpush2.xpose.msra.mxu0 %v431
        %522 = vmatprep.subr.mxu0 0.0
        %523 = vmatpush2.xpose.msra.mxu0 %v428
        %524 = vmatprep.subr.mxu0 0.0
        %525 = vmatpush2.xpose.msra.mxu0 %v425
        %526 = vmatprep.subr.mxu0 0.0
        %527 = vmatpush2.xpose.msra.mxu0 %v422
        %528 = vmatprep.subr.mxu0 0.0
        %529 = vmatpush2.xpose.msra.mxu0 %v419
        %530 = vmatprep.mubr.f32.mxu0 0.0
        %531 = vmatmul.mubr.f32.gmra.mxu0 %v368
        %v532 = vpop.f32.mrf.mxu0
        %v533 = vadd.f32 0.0, %v532
        %v534 = vpop.f32.mrf.mxu0
        %v535 = vadd.f32 0.0, %v534
        %536 = vdwg.mxu0
        %v537 = vsel %vm298, %v533, -1e+30
        %v538 = vsel %vm299, %v535, -1e+30
        %539 = vmatprep.subr.mxu0 0.0
        %540 = vmatpush1.msra.mxu0 0.0
        %541 = vmatprep.subr.mxu0 0.0
        %542 = vmatpush1.msra.mxu0 0.0
        %543 = vmatprep.subr.mxu0 0.0
        %544 = vmatpush1.msra.mxu0 0.0
        %545 = vmatprep.subr.mxu0 0.0
        %546 = vmatpush1.msra.mxu0 0.0
        %547 = vmatprep.subr.mxu0 0.0
        %548 = vmatpush1.msra.mxu0 0.0
        %549 = vmatprep.subr.mxu0 0.0
        %550 = vmatpush1.msra.mxu0 0.0
        %551 = vmatprep.subr.mxu0 0.0
        %552 = vmatpush1.msra.mxu0 0.0
        %553 = vmatprep.subr.mxu0 0.0
        %554 = vmatpush1.msra.mxu0 0.0
        %555 = vmatprep.subr.mxu0 0.0
        %556 = vmatpush1.msra.mxu0 0.0
        %557 = vmatprep.subr.mxu0 0.0
        %558 = vmatpush1.msra.mxu0 0.0
        %559 = vmatprep.subr.mxu0 0.0
        %560 = vmatpush1.msra.mxu0 0.0
        %561 = vmatprep.subr.mxu0 0.0
        %562 = vmatpush1.msra.mxu0 0.0
        %563 = vmatprep.subr.mxu0 0.0
        %564 = vmatpush1.msra.mxu0 %v266
        %565 = vmatprep.subr.mxu0 0.0
        %566 = vmatpush1.msra.mxu0 %v265
        %567 = vmatprep.subr.mxu0 0.0
        %568 = vmatpush1.msra.mxu0 %v264
        %569 = vmatprep.subr.mxu0 0.0
        %570 = vmatpush1.msra.mxu0 %v263
        %571 = vmatprep.subr.mxu0 0.0
        %572 = vmatpush2.msra.mxu0 0.0
        %573 = vmatprep.subr.mxu0 0.0
        %574 = vmatpush2.msra.mxu0 0.0
        %575 = vmatprep.subr.mxu0 0.0
        %576 = vmatpush2.msra.mxu0 0.0
        %577 = vmatprep.subr.mxu0 0.0
        %578 = vmatpush2.msra.mxu0 0.0
        %579 = vmatprep.subr.mxu0 0.0
        %580 = vmatpush2.msra.mxu0 0.0
        %581 = vmatprep.subr.mxu0 0.0
        %582 = vmatpush2.msra.mxu0 0.0
        %583 = vmatprep.subr.mxu0 0.0
        %584 = vmatpush2.msra.mxu0 0.0
        %585 = vmatprep.subr.mxu0 0.0
        %586 = vmatpush2.msra.mxu0 0.0
        %587 = vmatprep.subr.mxu0 0.0
        %588 = vmatpush2.msra.mxu0 0.0
        %589 = vmatprep.subr.mxu0 0.0
        %590 = vmatpush2.msra.mxu0 0.0
        %591 = vmatprep.subr.mxu0 0.0
        %592 = vmatpush2.msra.mxu0 0.0
        %593 = vmatprep.subr.mxu0 0.0
        %594 = vmatpush2.msra.mxu0 0.0
        %595 = vmatprep.subr.mxu0 0.0
        %596 = vmatpush2.msra.mxu0 0.0
        %597 = vmatprep.subr.mxu0 0.0
        %598 = vmatpush2.msra.mxu0 0.0
        %599 = vmatprep.subr.mxu0 0.0
        %600 = vmatpush2.msra.mxu0 0.0
        %601 = vmatprep.subr.mxu0 0.0
        %602 = vmatpush2.msra.mxu0 0.0
        %603 = vmatprep.mubr.f32.mxu0 0.0
        %604 = vmatmul.mubr.f32.gmra.mxu0 %v368
        %v605 = vpop.f32.mrf.mxu0
        %v606 = vadd.f32 0.0, %v605
        %v607 = vpop.f32.mrf.mxu0
        %608 = vdwg.mxu0
        %609 = vmax.xlane.f32.xlu0 %v537
        %v610 = vpop.xlane.xlu0 %609
        %v611 = vsub.f32 %v537, %v610
        %v612 = vmul.f32 %v611, 1.442695
        %v613 = vpow.pop %v612
        %614 = vadd.xlane.f32.xlu0 %v613
        %v615 = vpop.xlane.xlu0 %614
        %616 = vmatprep.subr.mxu0 0.0
        %617 = vmatpush1.msra.mxu0 %v348
        %618 = vmatprep.subr.mxu0 0.0
        %619 = vmatpush1.msra.mxu0 %v347
        %620 = vmatprep.subr.mxu0 0.0
        %621 = vmatpush1.msra.mxu0 %v346
        %622 = vmatprep.subr.mxu0 0.0
        %623 = vmatpush1.msra.mxu0 %v345
        %624 = vmatprep.subr.mxu0 0.0
        %625 = vmatpush1.msra.mxu0 %v344
        %626 = vmatprep.subr.mxu0 0.0
        %627 = vmatpush1.msra.mxu0 %v343
        %628 = vmatprep.subr.mxu0 0.0
        %629 = vmatpush1.msra.mxu0 %v342
        %630 = vmatprep.subr.mxu0 0.0
        %631 = vmatpush1.msra.mxu0 %v341
        %632 = vmatprep.subr.mxu0 0.0
        %633 = vmatpush1.msra.mxu0 %v340
        %634 = vmatprep.subr.mxu0 0.0
        %635 = vmatpush1.msra.mxu0 %v339
        %636 = vmatprep.subr.mxu0 0.0
        %637 = vmatpush1.msra.mxu0 %v338
        %638 = vmatprep.subr.mxu0 0.0
        %639 = vmatpush1.msra.mxu0 %v337
        %640 = vmatprep.subr.mxu0 0.0
        %641 = vmatpush1.msra.mxu0 %v336
        %642 = vmatprep.subr.mxu0 0.0
        %643 = vmatpush1.msra.mxu0 %v335
        %644 = vmatprep.subr.mxu0 0.0
        %645 = vmatpush1.msra.mxu0 %v334
        %646 = vmatprep.subr.mxu0 0.0
        %647 = vmatpush1.msra.mxu0 %v333
        %648 = vmatprep.subr.mxu0 0.0
        %649 = vmatpush2.msra.mxu0 0.0
        %650 = vmatprep.subr.mxu0 0.0
        %651 = vmatpush2.msra.mxu0 0.0
        %652 = vmatprep.subr.mxu0 0.0
        %653 = vmatpush2.msra.mxu0 0.0
        %654 = vmatprep.subr.mxu0 0.0
        %655 = vmatpush2.msra.mxu0 0.0
        %656 = vmatprep.subr.mxu0 0.0
        %657 = vmatpush2.msra.mxu0 0.0
        %658 = vmatprep.subr.mxu0 0.0
        %659 = vmatpush2.msra.mxu0 0.0
        %660 = vmatprep.subr.mxu0 0.0
        %661 = vmatpush2.msra.mxu0 0.0
        %662 = vmatprep.subr.mxu0 0.0
        %663 = vmatpush2.msra.mxu0 0.0
        %664 = vmatprep.subr.mxu0 0.0
        %665 = vmatpush2.msra.mxu0 0.0
        %666 = vmatprep.subr.mxu0 0.0
        %667 = vmatpush2.msra.mxu0 0.0
        %668 = vmatprep.subr.mxu0 0.0
        %669 = vmatpush2.msra.mxu0 0.0
        %670 = vmatprep.subr.mxu0 0.0
        %671 = vmatpush2.msra.mxu0 0.0
        %672 = vmatprep.subr.mxu0 0.0
        %673 = vmatpush2.msra.mxu0 0.0
        %674 = vmatprep.subr.mxu0 0.0
        %675 = vmatpush2.msra.mxu0 0.0
        %676 = vmatprep.subr.mxu0 0.0
        %677 = vmatpush2.msra.mxu0 0.0
        %678 = vmatprep.subr.mxu0 0.0
        %679 = vmatpush2.msra.mxu0 0.0
        %680 = vmatprep.mubr.f32.mxu0 0.0
        %681 = vmatmul.mubr.f32.gmra.mxu0 %v613
        %v682 = vpop.f32.mrf.mxu0
        %v683 = vadd.f32 0.0, %v682
        %v684 = vpop.f32.mrf.mxu0
        %685 = vdwg.mxu0
        %v686 = vrcp.pop %v615
        %v687 = vmul.f32 %v683, %v686
        %v688 = vmul.f32 %v606, %v687
        %v689 = vsel %vm366, %v688, 0.0
        %690 = vadd.xlane.f32.xlu0 %v689
        %v691 = vpop.xlane.xlu0 %690
        %692 = vmax.xlane.f32.xlu0 %v538
        %v693 = vpop.xlane.xlu0 %692
        %v694 = vsub.f32 %v538, %v693
        %v695 = vmul.f32 %v694, 1.442695
        %v696 = vpow.pop %v695
        %697 = vadd.xlane.f32.xlu0 %v696
        %v698 = vpop.xlane.xlu0 %697
        %699 = vmatprep.subr.mxu0 0.0
        %700 = vmatpush1.msra.mxu0 %v364
        %701 = vmatprep.subr.mxu0 0.0
        %702 = vmatpush1.msra.mxu0 %v363
        %703 = vmatprep.subr.mxu0 0.0
        %704 = vmatpush1.msra.mxu0 %v362
        %705 = vmatprep.subr.mxu0 0.0
        %706 = vmatpush1.msra.mxu0 %v361
        %707 = vmatprep.subr.mxu0 0.0
        %708 = vmatpush1.msra.mxu0 %v360
        %709 = vmatprep.subr.mxu0 0.0
        %710 = vmatpush1.msra.mxu0 %v359
        %711 = vmatprep.subr.mxu0 0.0
        %712 = vmatpush1.msra.mxu0 %v358
        %713 = vmatprep.subr.mxu0 0.0
        %714 = vmatpush1.msra.mxu0 %v357
        %715 = vmatprep.subr.mxu0 0.0
        %716 = vmatpush1.msra.mxu0 %v356
        %717 = vmatprep.subr.mxu0 0.0
        %718 = vmatpush1.msra.mxu0 %v355
        %719 = vmatprep.subr.mxu0 0.0
        %720 = vmatpush1.msra.mxu0 %v354
        %721 = vmatprep.subr.mxu0 0.0
        %722 = vmatpush1.msra.mxu0 %v353
        %723 = vmatprep.subr.mxu0 0.0
        %724 = vmatpush1.msra.mxu0 %v352
        %725 = vmatprep.subr.mxu0 0.0
        %726 = vmatpush1.msra.mxu0 %v351
        %727 = vmatprep.subr.mxu0 0.0
        %728 = vmatpush1.msra.mxu0 %v350
        %729 = vmatprep.subr.mxu0 0.0
        %730 = vmatpush1.msra.mxu0 %v349
        %731 = vmatprep.subr.mxu0 0.0
        %732 = vmatpush2.msra.mxu0 0.0
        %733 = vmatprep.subr.mxu0 0.0
        %734 = vmatpush2.msra.mxu0 0.0
        %735 = vmatprep.subr.mxu0 0.0
        %736 = vmatpush2.msra.mxu0 0.0
        %737 = vmatprep.subr.mxu0 0.0
        %738 = vmatpush2.msra.mxu0 0.0
        %739 = vmatprep.subr.mxu0 0.0
        %740 = vmatpush2.msra.mxu0 0.0
        %741 = vmatprep.subr.mxu0 0.0
        %742 = vmatpush2.msra.mxu0 0.0
        %743 = vmatprep.subr.mxu0 0.0
        %744 = vmatpush2.msra.mxu0 0.0
        %745 = vmatprep.subr.mxu0 0.0
        %746 = vmatpush2.msra.mxu0 0.0
        %747 = vmatprep.subr.mxu0 0.0
        %748 = vmatpush2.msra.mxu0 0.0
        %749 = vmatprep.subr.mxu0 0.0
        %750 = vmatpush2.msra.mxu0 0.0
        %751 = vmatprep.subr.mxu0 0.0
        %752 = vmatpush2.msra.mxu0 0.0
        %753 = vmatprep.subr.mxu0 0.0
        %754 = vmatpush2.msra.mxu0 0.0
        %755 = vmatprep.subr.mxu0 0.0
        %756 = vmatpush2.msra.mxu0 0.0
        %757 = vmatprep.subr.mxu0 0.0
        %758 = vmatpush2.msra.mxu0 0.0
        %759 = vmatprep.subr.mxu0 0.0
        %760 = vmatpush2.msra.mxu0 0.0
        %761 = vmatprep.subr.mxu0 0.0
        %762 = vmatpush2.msra.mxu0 0.0
        %763 = vmatprep.mubr.f32.mxu0 0.0
        %764 = vmatmul.mubr.f32.gmra.mxu0 %v696
        %v765 = vpop.f32.mrf.mxu0
        %v766 = vadd.f32 0.0, %v765
        %v767 = vpop.f32.mrf.mxu0
        %768 = vdwg.mxu0
        %v769 = vrcp.pop %v698
        %v770 = vmul.f32 %v766, %v769
        %v771 = vmul.f32 %v606, %v770
        %v772 = vsel %vm366, %v771, 0.0
        %773 = vadd.xlane.f32.xlu0 %v772
        %v774 = vpop.xlane.xlu0 %773
        %v775 = vmax.f32 %v691, %v774
        %v776 = vsub.f32 %v691, %v775
        %v777 = vmul.f32 %v776, 1.442695
        %v778 = vpow.pop %v777
        %v779 = vsub.f32 %v774, %v775
        %v780 = vmul.f32 %v779, 1.442695
        %v781 = vpow.pop %v780
        %v782 = vadd.f32 %v778, %v781
        %v783 = vmul.f32 %v778, %v687
        %v784 = vmul.f32 %v781, %v770
        %v785 = vadd.f32 %v783, %v784
        %v786 = vrcp.pop %v782
        %v787 = vmul.f32 %v785, %v786
        %v789 = vsel %vm366, %v787, 0
        %791 = vmatprep.subr.mxu0 0.0
        %792 = vmatpush1.msra.mxu0 0.0
        %793 = vmatprep.subr.mxu0 0.0
        %794 = vmatpush1.msra.mxu0 0.0
        %795 = vmatprep.subr.mxu0 0.0
        %796 = vmatpush1.msra.mxu0 0.0
        %797 = vmatprep.subr.mxu0 0.0
        %798 = vmatpush1.msra.mxu0 0.0
        %799 = vmatprep.subr.mxu0 0.0
        %800 = vmatpush1.msra.mxu0 0.0
        %801 = vmatprep.subr.mxu0 0.0
        %802 = vmatpush1.msra.mxu0 0.0
        %803 = vmatprep.subr.mxu0 0.0
        %804 = vmatpush1.msra.mxu0 0.0
        %805 = vmatprep.subr.mxu0 0.0
        %806 = vmatpush1.msra.mxu0 0.0
        %807 = vmatprep.subr.mxu0 0.0
        %808 = vmatpush1.msra.mxu0 0.0
        %809 = vmatprep.subr.mxu0 0.0
        %810 = vmatpush1.msra.mxu0 0.0
        %811 = vmatprep.subr.mxu0 0.0
        %812 = vmatpush1.msra.mxu0 0.0
        %813 = vmatprep.subr.mxu0 0.0
        %814 = vmatpush1.msra.mxu0 0.0
        %815 = vmatprep.subr.mxu0 0.0
        %816 = vmatpush1.msra.mxu0 %v270
        %817 = vmatprep.subr.mxu0 0.0
        %818 = vmatpush1.msra.mxu0 %v269
        %819 = vmatprep.subr.mxu0 0.0
        %820 = vmatpush1.msra.mxu0 %v268
        %821 = vmatprep.subr.mxu0 0.0
        %822 = vmatpush1.msra.mxu0 %v267
        %823 = vmatprep.subr.mxu0 0.0
        %824 = vmatpush2.msra.mxu0 0.0
        %825 = vmatprep.subr.mxu0 0.0
        %826 = vmatpush2.msra.mxu0 0.0
        %827 = vmatprep.subr.mxu0 0.0
        %828 = vmatpush2.msra.mxu0 0.0
        %829 = vmatprep.subr.mxu0 0.0
        %830 = vmatpush2.msra.mxu0 0.0
        %831 = vmatprep.subr.mxu0 0.0
        %832 = vmatpush2.msra.mxu0 0.0
        %833 = vmatprep.subr.mxu0 0.0
        %834 = vmatpush2.msra.mxu0 0.0
        %835 = vmatprep.subr.mxu0 0.0
        %836 = vmatpush2.msra.mxu0 0.0
        %837 = vmatprep.subr.mxu0 0.0
        %838 = vmatpush2.msra.mxu0 0.0
        %839 = vmatprep.subr.mxu0 0.0
        %840 = vmatpush2.msra.mxu0 0.0
        %841 = vmatprep.subr.mxu0 0.0
        %842 = vmatpush2.msra.mxu0 0.0
        %843 = vmatprep.subr.mxu0 0.0
        %844 = vmatpush2.msra.mxu0 0.0
        %845 = vmatprep.subr.mxu0 0.0
        %846 = vmatpush2.msra.mxu0 0.0
        %847 = vmatprep.subr.mxu0 0.0
        %848 = vmatpush2.msra.mxu0 0.0
        %849 = vmatprep.subr.mxu0 0.0
        %850 = vmatpush2.msra.mxu0 0.0
        %851 = vmatprep.subr.mxu0 0.0
        %852 = vmatpush2.msra.mxu0 0.0
        %853 = vmatprep.subr.mxu0 0.0
        %854 = vmatpush2.msra.mxu0 0.0
        %855 = vmatprep.mubr.f32.mxu0 0.0
        %856 = vmatmul.mubr.f32.gmra.mxu0 %v789
        %v857 = vpop.f32.mrf.mxu0
        %v858 = vadd.f32 0.0, %v857
        %v859 = vpop.f32.mrf.mxu0
        %860 = vdwg.mxu0
        %s861 = scalar_lea.vmem %s252, 8
        %v862 = vld [vmem:[%s861] sm:$0xff]
        %s863 = scalar_lea.vmem %s257, 256
        %v864 = vld [vmem:[%s863] sm:$0xff]
        %v865 = vld [vmem:[%s863 + $0x8] sm:$0xff]
        %v866 = vld [vmem:[%s863 + $0x10] sm:$0xff]
        %v867 = vld [vmem:[%s863 + $0x18] sm:$0xff]
        %v868 = vld [vmem:[%s863 + $0x20] sm:$0xff]
        %v869 = vld [vmem:[%s863 + $0x28] sm:$0xff]
        %v870 = vld [vmem:[%s863 + $0x30] sm:$0xff]
        %v871 = vld [vmem:[%s863 + $0x38] sm:$0xff]
        %v872 = vld [vmem:[%s863 + $0x40] sm:$0xff]
        %v873 = vld [vmem:[%s863 + $0x48] sm:$0xff]
        %v874 = vld [vmem:[%s863 + $0x50] sm:$0xff]
        %v875 = vld [vmem:[%s863 + $0x58] sm:$0xff]
        %v876 = vld [vmem:[%s863 + $0x60] sm:$0xff]
        %v877 = vld [vmem:[%s863 + $0x68] sm:$0xff]
        %v878 = vld [vmem:[%s863 + $0x70] sm:$0xff]
        %v879 = vld [vmem:[%s863 + $0x78] sm:$0xff]
        %v880 = vld [vmem:[%s863 + $0x80] sm:$0xff]
        %v881 = vld [vmem:[%s863 + $0x88] sm:$0xff]
        %v882 = vld [vmem:[%s863 + $0x90] sm:$0xff]
        %v883 = vld [vmem:[%s863 + $0x98] sm:$0xff]
        %v884 = vld [vmem:[%s863 + $0xa0] sm:$0xff]
        %v885 = vld [vmem:[%s863 + $0xa8] sm:$0xff]
        %v886 = vld [vmem:[%s863 + $0xb0] sm:$0xff]
        %v887 = vld [vmem:[%s863 + $0xb8] sm:$0xff]
        %v888 = vld [vmem:[%s863 + $0xc0] sm:$0xff]
        %v889 = vld [vmem:[%s863 + $0xc8] sm:$0xff]
        %v890 = vld [vmem:[%s863 + $0xd0] sm:$0xff]
        %v891 = vld [vmem:[%s863 + $0xd8] sm:$0xff]
        %v892 = vld [vmem:[%s863 + $0xe0] sm:$0xff]
        %v893 = vld [vmem:[%s863 + $0xe8] sm:$0xff]
        %v894 = vld [vmem:[%s863 + $0xf0] sm:$0xff]
        %v895 = vld [vmem:[%s863 + $0xf8] sm:$0xff]
        %s896 = scalar_lea.vmem %s262, 256
        %v897 = vld [vmem:[%s896] sm:$0xff]
        %v898 = vld [vmem:[%s896 + $0x8] sm:$0xff]
        %v899 = vld [vmem:[%s896 + $0x10] sm:$0xff]
        %v900 = vld [vmem:[%s896 + $0x18] sm:$0xff]
        %v901 = vld [vmem:[%s896 + $0x20] sm:$0xff]
        %v902 = vld [vmem:[%s896 + $0x28] sm:$0xff]
        %v903 = vld [vmem:[%s896 + $0x30] sm:$0xff]
        %v904 = vld [vmem:[%s896 + $0x38] sm:$0xff]
        %v905 = vld [vmem:[%s896 + $0x40] sm:$0xff]
        %v906 = vld [vmem:[%s896 + $0x48] sm:$0xff]
        %v907 = vld [vmem:[%s896 + $0x50] sm:$0xff]
        %v908 = vld [vmem:[%s896 + $0x58] sm:$0xff]
        %v909 = vld [vmem:[%s896 + $0x60] sm:$0xff]
        %v910 = vld [vmem:[%s896 + $0x68] sm:$0xff]
        %v911 = vld [vmem:[%s896 + $0x70] sm:$0xff]
        %v912 = vld [vmem:[%s896 + $0x78] sm:$0xff]
        %v913 = vld [vmem:[%s896 + $0x80] sm:$0xff]
        %v914 = vld [vmem:[%s896 + $0x88] sm:$0xff]
        %v915 = vld [vmem:[%s896 + $0x90] sm:$0xff]
        %v916 = vld [vmem:[%s896 + $0x98] sm:$0xff]
        %v917 = vld [vmem:[%s896 + $0xa0] sm:$0xff]
        %v918 = vld [vmem:[%s896 + $0xa8] sm:$0xff]
        %v919 = vld [vmem:[%s896 + $0xb0] sm:$0xff]
        %v920 = vld [vmem:[%s896 + $0xb8] sm:$0xff]
        %v921 = vld [vmem:[%s896 + $0xc0] sm:$0xff]
        %v922 = vld [vmem:[%s896 + $0xc8] sm:$0xff]
        %v923 = vld [vmem:[%s896 + $0xd0] sm:$0xff]
        %v924 = vld [vmem:[%s896 + $0xd8] sm:$0xff]
        %v925 = vld [vmem:[%s896 + $0xe0] sm:$0xff]
        %v926 = vld [vmem:[%s896 + $0xe8] sm:$0xff]
        %v927 = vld [vmem:[%s896 + $0xf0] sm:$0xff]
        %v928 = vld [vmem:[%s896 + $0xf8] sm:$0xff]
        %v929 = vmul.f32 %v862, 0.17677669
        %v931 = vsel %vm366, %v929, 0
        %v934 = vsel %vm366, %v864, 0
        %v937 = vsel %vm366, %v865, 0
        %v940 = vsel %vm366, %v866, 0
        %v943 = vsel %vm366, %v867, 0
        %v946 = vsel %vm366, %v868, 0
        %v949 = vsel %vm366, %v869, 0
        %v952 = vsel %vm366, %v870, 0
        %v955 = vsel %vm366, %v871, 0
        %v958 = vsel %vm366, %v872, 0
        %v961 = vsel %vm366, %v873, 0
        %v964 = vsel %vm366, %v874, 0
        %v967 = vsel %vm366, %v875, 0
        %v970 = vsel %vm366, %v876, 0
        %v973 = vsel %vm366, %v877, 0
        %v976 = vsel %vm366, %v878, 0
        %v979 = vsel %vm366, %v879, 0
        %v982 = vsel %vm366, %v880, 0
        %v985 = vsel %vm366, %v881, 0
        %v988 = vsel %vm366, %v882, 0
        %v991 = vsel %vm366, %v883, 0
        %v994 = vsel %vm366, %v884, 0
        %v997 = vsel %vm366, %v885, 0
        %v1000 = vsel %vm366, %v886, 0
        %v1003 = vsel %vm366, %v887, 0
        %v1006 = vsel %vm366, %v888, 0
        %v1009 = vsel %vm366, %v889, 0
        %v1012 = vsel %vm366, %v890, 0
        %v1015 = vsel %vm366, %v891, 0
        %v1018 = vsel %vm366, %v892, 0
        %v1021 = vsel %vm366, %v893, 0
        %v1024 = vsel %vm366, %v894, 0
        %v1027 = vsel %vm366, %v895, 0
        %1029 = vmatprep.subr.mxu0 0.0
        %1030 = vmatpush1.xpose.msra.mxu0 %v979
        %1031 = vmatprep.subr.mxu0 0.0
        %1032 = vmatpush1.xpose.msra.mxu0 %v976
        %1033 = vmatprep.subr.mxu0 0.0
        %1034 = vmatpush1.xpose.msra.mxu0 %v973
        %1035 = vmatprep.subr.mxu0 0.0
        %1036 = vmatpush1.xpose.msra.mxu0 %v970
        %1037 = vmatprep.subr.mxu0 0.0
        %1038 = vmatpush1.xpose.msra.mxu0 %v967
        %1039 = vmatprep.subr.mxu0 0.0
        %1040 = vmatpush1.xpose.msra.mxu0 %v964
        %1041 = vmatprep.subr.mxu0 0.0
        %1042 = vmatpush1.xpose.msra.mxu0 %v961
        %1043 = vmatprep.subr.mxu0 0.0
        %1044 = vmatpush1.xpose.msra.mxu0 %v958
        %1045 = vmatprep.subr.mxu0 0.0
        %1046 = vmatpush1.xpose.msra.mxu0 %v955
        %1047 = vmatprep.subr.mxu0 0.0
        %1048 = vmatpush1.xpose.msra.mxu0 %v952
        %1049 = vmatprep.subr.mxu0 0.0
        %1050 = vmatpush1.xpose.msra.mxu0 %v949
        %1051 = vmatprep.subr.mxu0 0.0
        %1052 = vmatpush1.xpose.msra.mxu0 %v946
        %1053 = vmatprep.subr.mxu0 0.0
        %1054 = vmatpush1.xpose.msra.mxu0 %v943
        %1055 = vmatprep.subr.mxu0 0.0
        %1056 = vmatpush1.xpose.msra.mxu0 %v940
        %1057 = vmatprep.subr.mxu0 0.0
        %1058 = vmatpush1.xpose.msra.mxu0 %v937
        %1059 = vmatprep.subr.mxu0 0.0
        %1060 = vmatpush1.xpose.msra.mxu0 %v934
        %1061 = vmatprep.subr.mxu0 0.0
        %1062 = vmatpush2.xpose.msra.mxu0 %v1027
        %1063 = vmatprep.subr.mxu0 0.0
        %1064 = vmatpush2.xpose.msra.mxu0 %v1024
        %1065 = vmatprep.subr.mxu0 0.0
        %1066 = vmatpush2.xpose.msra.mxu0 %v1021
        %1067 = vmatprep.subr.mxu0 0.0
        %1068 = vmatpush2.xpose.msra.mxu0 %v1018
        %1069 = vmatprep.subr.mxu0 0.0
        %1070 = vmatpush2.xpose.msra.mxu0 %v1015
        %1071 = vmatprep.subr.mxu0 0.0
        %1072 = vmatpush2.xpose.msra.mxu0 %v1012
        %1073 = vmatprep.subr.mxu0 0.0
        %1074 = vmatpush2.xpose.msra.mxu0 %v1009
        %1075 = vmatprep.subr.mxu0 0.0
        %1076 = vmatpush2.xpose.msra.mxu0 %v1006
        %1077 = vmatprep.subr.mxu0 0.0
        %1078 = vmatpush2.xpose.msra.mxu0 %v1003
        %1079 = vmatprep.subr.mxu0 0.0
        %1080 = vmatpush2.xpose.msra.mxu0 %v1000
        %1081 = vmatprep.subr.mxu0 0.0
        %1082 = vmatpush2.xpose.msra.mxu0 %v997
        %1083 = vmatprep.subr.mxu0 0.0
        %1084 = vmatpush2.xpose.msra.mxu0 %v994
        %1085 = vmatprep.subr.mxu0 0.0
        %1086 = vmatpush2.xpose.msra.mxu0 %v991
        %1087 = vmatprep.subr.mxu0 0.0
        %1088 = vmatpush2.xpose.msra.mxu0 %v988
        %1089 = vmatprep.subr.mxu0 0.0
        %1090 = vmatpush2.xpose.msra.mxu0 %v985
        %1091 = vmatprep.subr.mxu0 0.0
        %1092 = vmatpush2.xpose.msra.mxu0 %v982
        %1093 = vmatprep.mubr.f32.mxu0 0.0
        %1094 = vmatmul.mubr.f32.gmra.mxu0 %v931
        %v1095 = vpop.f32.mrf.mxu0
        %v1096 = vadd.f32 0.0, %v1095
        %v1097 = vpop.f32.mrf.mxu0
        %v1098 = vadd.f32 0.0, %v1097
        %1099 = vdwg.mxu0
        %v1100 = vsel %vm298, %v1096, -1e+30
        %v1101 = vsel %vm299, %v1098, -1e+30
        %1102 = vmatprep.subr.mxu0 0.0
        %1103 = vmatpush1.msra.mxu0 0.0
        %1104 = vmatprep.subr.mxu0 0.0
        %1105 = vmatpush1.msra.mxu0 0.0
        %1106 = vmatprep.subr.mxu0 0.0
        %1107 = vmatpush1.msra.mxu0 0.0
        %1108 = vmatprep.subr.mxu0 0.0
        %1109 = vmatpush1.msra.mxu0 0.0
        %1110 = vmatprep.subr.mxu0 0.0
        %1111 = vmatpush1.msra.mxu0 0.0
        %1112 = vmatprep.subr.mxu0 0.0
        %1113 = vmatpush1.msra.mxu0 0.0
        %1114 = vmatprep.subr.mxu0 0.0
        %1115 = vmatpush1.msra.mxu0 0.0
        %1116 = vmatprep.subr.mxu0 0.0
        %1117 = vmatpush1.msra.mxu0 0.0
        %1118 = vmatprep.subr.mxu0 0.0
        %1119 = vmatpush1.msra.mxu0 0.0
        %1120 = vmatprep.subr.mxu0 0.0
        %1121 = vmatpush1.msra.mxu0 0.0
        %1122 = vmatprep.subr.mxu0 0.0
        %1123 = vmatpush1.msra.mxu0 0.0
        %1124 = vmatprep.subr.mxu0 0.0
        %1125 = vmatpush1.msra.mxu0 0.0
        %1126 = vmatprep.subr.mxu0 0.0
        %1127 = vmatpush1.msra.mxu0 %v266
        %1128 = vmatprep.subr.mxu0 0.0
        %1129 = vmatpush1.msra.mxu0 %v265
        %1130 = vmatprep.subr.mxu0 0.0
        %1131 = vmatpush1.msra.mxu0 %v264
        %1132 = vmatprep.subr.mxu0 0.0
        %1133 = vmatpush1.msra.mxu0 %v263
        %1134 = vmatprep.subr.mxu0 0.0
        %1135 = vmatpush2.msra.mxu0 0.0
        %1136 = vmatprep.subr.mxu0 0.0
        %1137 = vmatpush2.msra.mxu0 0.0
        %1138 = vmatprep.subr.mxu0 0.0
        %1139 = vmatpush2.msra.mxu0 0.0
        %1140 = vmatprep.subr.mxu0 0.0
        %1141 = vmatpush2.msra.mxu0 0.0
        %1142 = vmatprep.subr.mxu0 0.0
        %1143 = vmatpush2.msra.mxu0 0.0
        %1144 = vmatprep.subr.mxu0 0.0
        %1145 = vmatpush2.msra.mxu0 0.0
        %1146 = vmatprep.subr.mxu0 0.0
        %1147 = vmatpush2.msra.mxu0 0.0
        %1148 = vmatprep.subr.mxu0 0.0
        %1149 = vmatpush2.msra.mxu0 0.0
        %1150 = vmatprep.subr.mxu0 0.0
        %1151 = vmatpush2.msra.mxu0 0.0
        %1152 = vmatprep.subr.mxu0 0.0
        %1153 = vmatpush2.msra.mxu0 0.0
        %1154 = vmatprep.subr.mxu0 0.0
        %1155 = vmatpush2.msra.mxu0 0.0
        %1156 = vmatprep.subr.mxu0 0.0
        %1157 = vmatpush2.msra.mxu0 0.0
        %1158 = vmatprep.subr.mxu0 0.0
        %1159 = vmatpush2.msra.mxu0 0.0
        %1160 = vmatprep.subr.mxu0 0.0
        %1161 = vmatpush2.msra.mxu0 0.0
        %1162 = vmatprep.subr.mxu0 0.0
        %1163 = vmatpush2.msra.mxu0 0.0
        %1164 = vmatprep.subr.mxu0 0.0
        %1165 = vmatpush2.msra.mxu0 0.0
        %1166 = vmatprep.mubr.f32.mxu0 0.0
        %1167 = vmatmul.mubr.f32.gmra.mxu0 %v931
        %v1168 = vpop.f32.mrf.mxu0
        %v1169 = vadd.f32 0.0, %v1168
        %v1170 = vpop.f32.mrf.mxu0
        %1171 = vdwg.mxu0
        %1172 = vmax.xlane.f32.xlu0 %v1100
        %v1173 = vpop.xlane.xlu0 %1172
        %v1174 = vsub.f32 %v1100, %v1173
        %v1175 = vmul.f32 %v1174, 1.442695
        %v1176 = vpow.pop %v1175
        %1177 = vadd.xlane.f32.xlu0 %v1176
        %v1178 = vpop.xlane.xlu0 %1177
        %1179 = vmatprep.subr.mxu0 0.0
        %1180 = vmatpush1.msra.mxu0 %v912
        %1181 = vmatprep.subr.mxu0 0.0
        %1182 = vmatpush1.msra.mxu0 %v911
        %1183 = vmatprep.subr.mxu0 0.0
        %1184 = vmatpush1.msra.mxu0 %v910
        %1185 = vmatprep.subr.mxu0 0.0
        %1186 = vmatpush1.msra.mxu0 %v909
        %1187 = vmatprep.subr.mxu0 0.0
        %1188 = vmatpush1.msra.mxu0 %v908
        %1189 = vmatprep.subr.mxu0 0.0
        %1190 = vmatpush1.msra.mxu0 %v907
        %1191 = vmatprep.subr.mxu0 0.0
        %1192 = vmatpush1.msra.mxu0 %v906
        %1193 = vmatprep.subr.mxu0 0.0
        %1194 = vmatpush1.msra.mxu0 %v905
        %1195 = vmatprep.subr.mxu0 0.0
        %1196 = vmatpush1.msra.mxu0 %v904
        %1197 = vmatprep.subr.mxu0 0.0
        %1198 = vmatpush1.msra.mxu0 %v903
        %1199 = vmatprep.subr.mxu0 0.0
        %1200 = vmatpush1.msra.mxu0 %v902
        %1201 = vmatprep.subr.mxu0 0.0
        %1202 = vmatpush1.msra.mxu0 %v901
        %1203 = vmatprep.subr.mxu0 0.0
        %1204 = vmatpush1.msra.mxu0 %v900
        %1205 = vmatprep.subr.mxu0 0.0
        %1206 = vmatpush1.msra.mxu0 %v899
        %1207 = vmatprep.subr.mxu0 0.0
        %1208 = vmatpush1.msra.mxu0 %v898
        %1209 = vmatprep.subr.mxu0 0.0
        %1210 = vmatpush1.msra.mxu0 %v897
        %1211 = vmatprep.subr.mxu0 0.0
        %1212 = vmatpush2.msra.mxu0 0.0
        %1213 = vmatprep.subr.mxu0 0.0
        %1214 = vmatpush2.msra.mxu0 0.0
        %1215 = vmatprep.subr.mxu0 0.0
        %1216 = vmatpush2.msra.mxu0 0.0
        %1217 = vmatprep.subr.mxu0 0.0
        %1218 = vmatpush2.msra.mxu0 0.0
        %1219 = vmatprep.subr.mxu0 0.0
        %1220 = vmatpush2.msra.mxu0 0.0
        %1221 = vmatprep.subr.mxu0 0.0
        %1222 = vmatpush2.msra.mxu0 0.0
        %1223 = vmatprep.subr.mxu0 0.0
        %1224 = vmatpush2.msra.mxu0 0.0
        %1225 = vmatprep.subr.mxu0 0.0
        %1226 = vmatpush2.msra.mxu0 0.0
        %1227 = vmatprep.subr.mxu0 0.0
        %1228 = vmatpush2.msra.mxu0 0.0
        %1229 = vmatprep.subr.mxu0 0.0
        %1230 = vmatpush2.msra.mxu0 0.0
        %1231 = vmatprep.subr.mxu0 0.0
        %1232 = vmatpush2.msra.mxu0 0.0
        %1233 = vmatprep.subr.mxu0 0.0
        %1234 = vmatpush2.msra.mxu0 0.0
        %1235 = vmatprep.subr.mxu0 0.0
        %1236 = vmatpush2.msra.mxu0 0.0
        %1237 = vmatprep.subr.mxu0 0.0
        %1238 = vmatpush2.msra.mxu0 0.0
        %1239 = vmatprep.subr.mxu0 0.0
        %1240 = vmatpush2.msra.mxu0 0.0
        %1241 = vmatprep.subr.mxu0 0.0
        %1242 = vmatpush2.msra.mxu0 0.0
        %1243 = vmatprep.mubr.f32.mxu0 0.0
        %1244 = vmatmul.mubr.f32.gmra.mxu0 %v1176
        %v1245 = vpop.f32.mrf.mxu0
        %v1246 = vadd.f32 0.0, %v1245
        %v1247 = vpop.f32.mrf.mxu0
        %1248 = vdwg.mxu0
        %v1249 = vrcp.pop %v1178
        %v1250 = vmul.f32 %v1246, %v1249
        %v1251 = vmul.f32 %v1169, %v1250
        %v1252 = vsel %vm366, %v1251, 0.0
        %1253 = vadd.xlane.f32.xlu0 %v1252
        %v1254 = vpop.xlane.xlu0 %1253
        %1255 = vmax.xlane.f32.xlu0 %v1101
        %v1256 = vpop.xlane.xlu0 %1255
        %v1257 = vsub.f32 %v1101, %v1256
        %v1258 = vmul.f32 %v1257, 1.442695
        %v1259 = vpow.pop %v1258
        %1260 = vadd.xlane.f32.xlu0 %v1259
        %v1261 = vpop.xlane.xlu0 %1260
        %1262 = vmatprep.subr.mxu0 0.0
        %1263 = vmatpush1.msra.mxu0 %v928
        %1264 = vmatprep.subr.mxu0 0.0
        %1265 = vmatpush1.msra.mxu0 %v927
        %1266 = vmatprep.subr.mxu0 0.0
        %1267 = vmatpush1.msra.mxu0 %v926
        %1268 = vmatprep.subr.mxu0 0.0
        %1269 = vmatpush1.msra.mxu0 %v925
        %1270 = vmatprep.subr.mxu0 0.0
        %1271 = vmatpush1.msra.mxu0 %v924
        %1272 = vmatprep.subr.mxu0 0.0
        %1273 = vmatpush1.msra.mxu0 %v923
        %1274 = vmatprep.subr.mxu0 0.0
        %1275 = vmatpush1.msra.mxu0 %v922
        %1276 = vmatprep.subr.mxu0 0.0
        %1277 = vmatpush1.msra.mxu0 %v921
        %1278 = vmatprep.subr.mxu0 0.0
        %1279 = vmatpush1.msra.mxu0 %v920
        %1280 = vmatprep.subr.mxu0 0.0
        %1281 = vmatpush1.msra.mxu0 %v919
        %1282 = vmatprep.subr.mxu0 0.0
        %1283 = vmatpush1.msra.mxu0 %v918
        %1284 = vmatprep.subr.mxu0 0.0
        %1285 = vmatpush1.msra.mxu0 %v917
        %1286 = vmatprep.subr.mxu0 0.0
        %1287 = vmatpush1.msra.mxu0 %v916
        %1288 = vmatprep.subr.mxu0 0.0
        %1289 = vmatpush1.msra.mxu0 %v915
        %1290 = vmatprep.subr.mxu0 0.0
        %1291 = vmatpush1.msra.mxu0 %v914
        %1292 = vmatprep.subr.mxu0 0.0
        %1293 = vmatpush1.msra.mxu0 %v913
        %1294 = vmatprep.subr.mxu0 0.0
        %1295 = vmatpush2.msra.mxu0 0.0
        %1296 = vmatprep.subr.mxu0 0.0
        %1297 = vmatpush2.msra.mxu0 0.0
        %1298 = vmatprep.subr.mxu0 0.0
        %1299 = vmatpush2.msra.mxu0 0.0
        %1300 = vmatprep.subr.mxu0 0.0
        %1301 = vmatpush2.msra.mxu0 0.0
        %1302 = vmatprep.subr.mxu0 0.0
        %1303 = vmatpush2.msra.mxu0 0.0
        %1304 = vmatprep.subr.mxu0 0.0
        %1305 = vmatpush2.msra.mxu0 0.0
        %1306 = vmatprep.subr.mxu0 0.0
        %1307 = vmatpush2.msra.mxu0 0.0
        %1308 = vmatprep.subr.mxu0 0.0
        %1309 = vmatpush2.msra.mxu0 0.0
        %1310 = vmatprep.subr.mxu0 0.0
        %1311 = vmatpush2.msra.mxu0 0.0
        %1312 = vmatprep.subr.mxu0 0.0
        %1313 = vmatpush2.msra.mxu0 0.0
        %1314 = vmatprep.subr.mxu0 0.0
        %1315 = vmatpush2.msra.mxu0 0.0
        %1316 = vmatprep.subr.mxu0 0.0
        %1317 = vmatpush2.msra.mxu0 0.0
        %1318 = vmatprep.subr.mxu0 0.0
        %1319 = vmatpush2.msra.mxu0 0.0
        %1320 = vmatprep.subr.mxu0 0.0
        %1321 = vmatpush2.msra.mxu0 0.0
        %1322 = vmatprep.subr.mxu0 0.0
        %1323 = vmatpush2.msra.mxu0 0.0
        %1324 = vmatprep.subr.mxu0 0.0
        %1325 = vmatpush2.msra.mxu0 0.0
        %1326 = vmatprep.mubr.f32.mxu0 0.0
        %1327 = vmatmul.mubr.f32.gmra.mxu0 %v1259
        %v1328 = vpop.f32.mrf.mxu0
        %v1329 = vadd.f32 0.0, %v1328
        %v1330 = vpop.f32.mrf.mxu0
        %1331 = vdwg.mxu0
        %v1332 = vrcp.pop %v1261
        %v1333 = vmul.f32 %v1329, %v1332
        %v1334 = vmul.f32 %v1169, %v1333
        %v1335 = vsel %vm366, %v1334, 0.0
        %1336 = vadd.xlane.f32.xlu0 %v1335
        %v1337 = vpop.xlane.xlu0 %1336
        %v1338 = vmax.f32 %v1254, %v1337
        %v1339 = vsub.f32 %v1254, %v1338
        %v1340 = vmul.f32 %v1339, 1.442695
        %v1341 = vpow.pop %v1340
        %v1342 = vsub.f32 %v1337, %v1338
        %v1343 = vmul.f32 %v1342, 1.442695
        %v1344 = vpow.pop %v1343
        %v1345 = vadd.f32 %v1341, %v1344
        %v1346 = vmul.f32 %v1341, %v1250
        %v1347 = vmul.f32 %v1344, %v1333
        %v1348 = vadd.f32 %v1346, %v1347
        %v1349 = vrcp.pop %v1345
        %v1350 = vmul.f32 %v1348, %v1349
        %v1352 = vsel %vm366, %v1350, 0
        %1354 = vmatprep.subr.mxu0 0.0
        %1355 = vmatpush1.msra.mxu0 0.0
        %1356 = vmatprep.subr.mxu0 0.0
        %1357 = vmatpush1.msra.mxu0 0.0
        %1358 = vmatprep.subr.mxu0 0.0
        %1359 = vmatpush1.msra.mxu0 0.0
        %1360 = vmatprep.subr.mxu0 0.0
        %1361 = vmatpush1.msra.mxu0 0.0
        %1362 = vmatprep.subr.mxu0 0.0
        %1363 = vmatpush1.msra.mxu0 0.0
        %1364 = vmatprep.subr.mxu0 0.0
        %1365 = vmatpush1.msra.mxu0 0.0
        %1366 = vmatprep.subr.mxu0 0.0
        %1367 = vmatpush1.msra.mxu0 0.0
        %1368 = vmatprep.subr.mxu0 0.0
        %1369 = vmatpush1.msra.mxu0 0.0
        %1370 = vmatprep.subr.mxu0 0.0
        %1371 = vmatpush1.msra.mxu0 0.0
        %1372 = vmatprep.subr.mxu0 0.0
        %1373 = vmatpush1.msra.mxu0 0.0
        %1374 = vmatprep.subr.mxu0 0.0
        %1375 = vmatpush1.msra.mxu0 0.0
        %1376 = vmatprep.subr.mxu0 0.0
        %1377 = vmatpush1.msra.mxu0 0.0
        %1378 = vmatprep.subr.mxu0 0.0
        %1379 = vmatpush1.msra.mxu0 %v270
        %1380 = vmatprep.subr.mxu0 0.0
        %1381 = vmatpush1.msra.mxu0 %v269
        %1382 = vmatprep.subr.mxu0 0.0
        %1383 = vmatpush1.msra.mxu0 %v268
        %1384 = vmatprep.subr.mxu0 0.0
        %1385 = vmatpush1.msra.mxu0 %v267
        %1386 = vmatprep.subr.mxu0 0.0
        %1387 = vmatpush2.msra.mxu0 0.0
        %1388 = vmatprep.subr.mxu0 0.0
        %1389 = vmatpush2.msra.mxu0 0.0
        %1390 = vmatprep.subr.mxu0 0.0
        %1391 = vmatpush2.msra.mxu0 0.0
        %1392 = vmatprep.subr.mxu0 0.0
        %1393 = vmatpush2.msra.mxu0 0.0
        %1394 = vmatprep.subr.mxu0 0.0
        %1395 = vmatpush2.msra.mxu0 0.0
        %1396 = vmatprep.subr.mxu0 0.0
        %1397 = vmatpush2.msra.mxu0 0.0
        %1398 = vmatprep.subr.mxu0 0.0
        %1399 = vmatpush2.msra.mxu0 0.0
        %1400 = vmatprep.subr.mxu0 0.0
        %1401 = vmatpush2.msra.mxu0 0.0
        %1402 = vmatprep.subr.mxu0 0.0
        %1403 = vmatpush2.msra.mxu0 0.0
        %1404 = vmatprep.subr.mxu0 0.0
        %1405 = vmatpush2.msra.mxu0 0.0
        %1406 = vmatprep.subr.mxu0 0.0
        %1407 = vmatpush2.msra.mxu0 0.0
        %1408 = vmatprep.subr.mxu0 0.0
        %1409 = vmatpush2.msra.mxu0 0.0
        %1410 = vmatprep.subr.mxu0 0.0
        %1411 = vmatpush2.msra.mxu0 0.0
        %1412 = vmatprep.subr.mxu0 0.0
        %1413 = vmatpush2.msra.mxu0 0.0
        %1414 = vmatprep.subr.mxu0 0.0
        %1415 = vmatpush2.msra.mxu0 0.0
        %1416 = vmatprep.subr.mxu0 0.0
        %1417 = vmatpush2.msra.mxu0 0.0
        %1418 = vmatprep.mubr.f32.mxu0 0.0
        %1419 = vmatmul.mubr.f32.gmra.mxu0 %v1352
        %v1420 = vpop.f32.mrf.mxu0
        %v1421 = vadd.f32 0.0, %v1420
        %v1422 = vpop.f32.mrf.mxu0
        %1423 = vdwg.mxu0
        %s1424 = scalar_lea.vmem %s252, 16
        %v1425 = vld [vmem:[%s1424] sm:$0xff]
        %s1426 = scalar_lea.vmem %s257, 512
        %v1427 = vld [vmem:[%s1426] sm:$0xff]
        %v1428 = vld [vmem:[%s1426 + $0x8] sm:$0xff]
        %v1429 = vld [vmem:[%s1426 + $0x10] sm:$0xff]
        %v1430 = vld [vmem:[%s1426 + $0x18] sm:$0xff]
        %v1431 = vld [vmem:[%s1426 + $0x20] sm:$0xff]
        %v1432 = vld [vmem:[%s1426 + $0x28] sm:$0xff]
        %v1433 = vld [vmem:[%s1426 + $0x30] sm:$0xff]
        %v1434 = vld [vmem:[%s1426 + $0x38] sm:$0xff]
        %v1435 = vld [vmem:[%s1426 + $0x40] sm:$0xff]
        %v1436 = vld [vmem:[%s1426 + $0x48] sm:$0xff]
        %v1437 = vld [vmem:[%s1426 + $0x50] sm:$0xff]
        %v1438 = vld [vmem:[%s1426 + $0x58] sm:$0xff]
        %v1439 = vld [vmem:[%s1426 + $0x60] sm:$0xff]
        %v1440 = vld [vmem:[%s1426 + $0x68] sm:$0xff]
        %v1441 = vld [vmem:[%s1426 + $0x70] sm:$0xff]
        %v1442 = vld [vmem:[%s1426 + $0x78] sm:$0xff]
        %v1443 = vld [vmem:[%s1426 + $0x80] sm:$0xff]
        %v1444 = vld [vmem:[%s1426 + $0x88] sm:$0xff]
        %v1445 = vld [vmem:[%s1426 + $0x90] sm:$0xff]
        %v1446 = vld [vmem:[%s1426 + $0x98] sm:$0xff]
        %v1447 = vld [vmem:[%s1426 + $0xa0] sm:$0xff]
        %v1448 = vld [vmem:[%s1426 + $0xa8] sm:$0xff]
        %v1449 = vld [vmem:[%s1426 + $0xb0] sm:$0xff]
        %v1450 = vld [vmem:[%s1426 + $0xb8] sm:$0xff]
        %v1451 = vld [vmem:[%s1426 + $0xc0] sm:$0xff]
        %v1452 = vld [vmem:[%s1426 + $0xc8] sm:$0xff]
        %v1453 = vld [vmem:[%s1426 + $0xd0] sm:$0xff]
        %v1454 = vld [vmem:[%s1426 + $0xd8] sm:$0xff]
        %v1455 = vld [vmem:[%s1426 + $0xe0] sm:$0xff]
        %v1456 = vld [vmem:[%s1426 + $0xe8] sm:$0xff]
        %v1457 = vld [vmem:[%s1426 + $0xf0] sm:$0xff]
        %v1458 = vld [vmem:[%s1426 + $0xf8] sm:$0xff]
        %s1459 = scalar_lea.vmem %s262, 512
        %v1460 = vld [vmem:[%s1459] sm:$0xff]
        %v1461 = vld [vmem:[%s1459 + $0x8] sm:$0xff]
        %v1462 = vld [vmem:[%s1459 + $0x10] sm:$0xff]
        %v1463 = vld [vmem:[%s1459 + $0x18] sm:$0xff]
        %v1464 = vld [vmem:[%s1459 + $0x20] sm:$0xff]
        %v1465 = vld [vmem:[%s1459 + $0x28] sm:$0xff]
        %v1466 = vld [vmem:[%s1459 + $0x30] sm:$0xff]
        %v1467 = vld [vmem:[%s1459 + $0x38] sm:$0xff]
        %v1468 = vld [vmem:[%s1459 + $0x40] sm:$0xff]
        %v1469 = vld [vmem:[%s1459 + $0x48] sm:$0xff]
        %v1470 = vld [vmem:[%s1459 + $0x50] sm:$0xff]
        %v1471 = vld [vmem:[%s1459 + $0x58] sm:$0xff]
        %v1472 = vld [vmem:[%s1459 + $0x60] sm:$0xff]
        %v1473 = vld [vmem:[%s1459 + $0x68] sm:$0xff]
        %v1474 = vld [vmem:[%s1459 + $0x70] sm:$0xff]
        %v1475 = vld [vmem:[%s1459 + $0x78] sm:$0xff]
        %v1476 = vld [vmem:[%s1459 + $0x80] sm:$0xff]
        %v1477 = vld [vmem:[%s1459 + $0x88] sm:$0xff]
        %v1478 = vld [vmem:[%s1459 + $0x90] sm:$0xff]
        %v1479 = vld [vmem:[%s1459 + $0x98] sm:$0xff]
        %v1480 = vld [vmem:[%s1459 + $0xa0] sm:$0xff]
        %v1481 = vld [vmem:[%s1459 + $0xa8] sm:$0xff]
        %v1482 = vld [vmem:[%s1459 + $0xb0] sm:$0xff]
        %v1483 = vld [vmem:[%s1459 + $0xb8] sm:$0xff]
        %v1484 = vld [vmem:[%s1459 + $0xc0] sm:$0xff]
        %v1485 = vld [vmem:[%s1459 + $0xc8] sm:$0xff]
        %v1486 = vld [vmem:[%s1459 + $0xd0] sm:$0xff]
        %v1487 = vld [vmem:[%s1459 + $0xd8] sm:$0xff]
        %v1488 = vld [vmem:[%s1459 + $0xe0] sm:$0xff]
        %v1489 = vld [vmem:[%s1459 + $0xe8] sm:$0xff]
        %v1490 = vld [vmem:[%s1459 + $0xf0] sm:$0xff]
        %v1491 = vld [vmem:[%s1459 + $0xf8] sm:$0xff]
        %v1492 = vmul.f32 %v1425, 0.17677669
        %v1494 = vsel %vm366, %v1492, 0
        %v1497 = vsel %vm366, %v1427, 0
        %v1500 = vsel %vm366, %v1428, 0
        %v1503 = vsel %vm366, %v1429, 0
        %v1506 = vsel %vm366, %v1430, 0
        %v1509 = vsel %vm366, %v1431, 0
        %v1512 = vsel %vm366, %v1432, 0
        %v1515 = vsel %vm366, %v1433, 0
        %v1518 = vsel %vm366, %v1434, 0
        %v1521 = vsel %vm366, %v1435, 0
        %v1524 = vsel %vm366, %v1436, 0
        %v1527 = vsel %vm366, %v1437, 0
        %v1530 = vsel %vm366, %v1438, 0
        %v1533 = vsel %vm366, %v1439, 0
        %v1536 = vsel %vm366, %v1440, 0
        %v1539 = vsel %vm366, %v1441, 0
        %v1542 = vsel %vm366, %v1442, 0
        %v1545 = vsel %vm366, %v1443, 0
        %v1548 = vsel %vm366, %v1444, 0
        %v1551 = vsel %vm366, %v1445, 0
        %v1554 = vsel %vm366, %v1446, 0
        %v1557 = vsel %vm366, %v1447, 0
        %v1560 = vsel %vm366, %v1448, 0
        %v1563 = vsel %vm366, %v1449, 0
        %v1566 = vsel %vm366, %v1450, 0
        %v1569 = vsel %vm366, %v1451, 0
        %v1572 = vsel %vm366, %v1452, 0
        %v1575 = vsel %vm366, %v1453, 0
        %v1578 = vsel %vm366, %v1454, 0
        %v1581 = vsel %vm366, %v1455, 0
        %v1584 = vsel %vm366, %v1456, 0
        %v1587 = vsel %vm366, %v1457, 0
        %v1590 = vsel %vm366, %v1458, 0
        %1592 = vmatprep.subr.mxu0 0.0
        %1593 = vmatpush1.xpose.msra.mxu0 %v1542
        %1594 = vmatprep.subr.mxu0 0.0
        %1595 = vmatpush1.xpose.msra.mxu0 %v1539
        %1596 = vmatprep.subr.mxu0 0.0
        %1597 = vmatpush1.xpose.msra.mxu0 %v1536
        %1598 = vmatprep.subr.mxu0 0.0
        %1599 = vmatpush1.xpose.msra.mxu0 %v1533
        %1600 = vmatprep.subr.mxu0 0.0
        %1601 = vmatpush1.xpose.msra.mxu0 %v1530
        %1602 = vmatprep.subr.mxu0 0.0
        %1603 = vmatpush1.xpose.msra.mxu0 %v1527
        %1604 = vmatprep.subr.mxu0 0.0
        %1605 = vmatpush1.xpose.msra.mxu0 %v1524
        %1606 = vmatprep.subr.mxu0 0.0
        %1607 = vmatpush1.xpose.msra.mxu0 %v1521
        %1608 = vmatprep.subr.mxu0 0.0
        %1609 = vmatpush1.xpose.msra.mxu0 %v1518
        %1610 = vmatprep.subr.mxu0 0.0
        %1611 = vmatpush1.xpose.msra.mxu0 %v1515
        %1612 = vmatprep.subr.mxu0 0.0
        %1613 = vmatpush1.xpose.msra.mxu0 %v1512
        %1614 = vmatprep.subr.mxu0 0.0
        %1615 = vmatpush1.xpose.msra.mxu0 %v1509
        %1616 = vmatprep.subr.mxu0 0.0
        %1617 = vmatpush1.xpose.msra.mxu0 %v1506
        %1618 = vmatprep.subr.mxu0 0.0
        %1619 = vmatpush1.xpose.msra.mxu0 %v1503
        %1620 = vmatprep.subr.mxu0 0.0
        %1621 = vmatpush1.xpose.msra.mxu0 %v1500
        %1622 = vmatprep.subr.mxu0 0.0
        %1623 = vmatpush1.xpose.msra.mxu0 %v1497
        %1624 = vmatprep.subr.mxu0 0.0
        %1625 = vmatpush2.xpose.msra.mxu0 %v1590
        %1626 = vmatprep.subr.mxu0 0.0
        %1627 = vmatpush2.xpose.msra.mxu0 %v1587
        %1628 = vmatprep.subr.mxu0 0.0
        %1629 = vmatpush2.xpose.msra.mxu0 %v1584
        %1630 = vmatprep.subr.mxu0 0.0
        %1631 = vmatpush2.xpose.msra.mxu0 %v1581
        %1632 = vmatprep.subr.mxu0 0.0
        %1633 = vmatpush2.xpose.msra.mxu0 %v1578
        %1634 = vmatprep.subr.mxu0 0.0
        %1635 = vmatpush2.xpose.msra.mxu0 %v1575
        %1636 = vmatprep.subr.mxu0 0.0
        %1637 = vmatpush2.xpose.msra.mxu0 %v1572
        %1638 = vmatprep.subr.mxu0 0.0
        %1639 = vmatpush2.xpose.msra.mxu0 %v1569
        %1640 = vmatprep.subr.mxu0 0.0
        %1641 = vmatpush2.xpose.msra.mxu0 %v1566
        %1642 = vmatprep.subr.mxu0 0.0
        %1643 = vmatpush2.xpose.msra.mxu0 %v1563
        %1644 = vmatprep.subr.mxu0 0.0
        %1645 = vmatpush2.xpose.msra.mxu0 %v1560
        %1646 = vmatprep.subr.mxu0 0.0
        %1647 = vmatpush2.xpose.msra.mxu0 %v1557
        %1648 = vmatprep.subr.mxu0 0.0
        %1649 = vmatpush2.xpose.msra.mxu0 %v1554
        %1650 = vmatprep.subr.mxu0 0.0
        %1651 = vmatpush2.xpose.msra.mxu0 %v1551
        %1652 = vmatprep.subr.mxu0 0.0
        %1653 = vmatpush2.xpose.msra.mxu0 %v1548
        %1654 = vmatprep.subr.mxu0 0.0
        %1655 = vmatpush2.xpose.msra.mxu0 %v1545
        %1656 = vmatprep.mubr.f32.mxu0 0.0
        %1657 = vmatmul.mubr.f32.gmra.mxu0 %v1494
        %v1658 = vpop.f32.mrf.mxu0
        %v1659 = vadd.f32 0.0, %v1658
        %v1660 = vpop.f32.mrf.mxu0
        %v1661 = vadd.f32 0.0, %v1660
        %1662 = vdwg.mxu0
        %v1663 = vsel %vm298, %v1659, -1e+30
        %v1664 = vsel %vm299, %v1661, -1e+30
        %1665 = vmatprep.subr.mxu0 0.0
        %1666 = vmatpush1.msra.mxu0 0.0
        %1667 = vmatprep.subr.mxu0 0.0
        %1668 = vmatpush1.msra.mxu0 0.0
        %1669 = vmatprep.subr.mxu0 0.0
        %1670 = vmatpush1.msra.mxu0 0.0
        %1671 = vmatprep.subr.mxu0 0.0
        %1672 = vmatpush1.msra.mxu0 0.0
        %1673 = vmatprep.subr.mxu0 0.0
        %1674 = vmatpush1.msra.mxu0 0.0
        %1675 = vmatprep.subr.mxu0 0.0
        %1676 = vmatpush1.msra.mxu0 0.0
        %1677 = vmatprep.subr.mxu0 0.0
        %1678 = vmatpush1.msra.mxu0 0.0
        %1679 = vmatprep.subr.mxu0 0.0
        %1680 = vmatpush1.msra.mxu0 0.0
        %1681 = vmatprep.subr.mxu0 0.0
        %1682 = vmatpush1.msra.mxu0 0.0
        %1683 = vmatprep.subr.mxu0 0.0
        %1684 = vmatpush1.msra.mxu0 0.0
        %1685 = vmatprep.subr.mxu0 0.0
        %1686 = vmatpush1.msra.mxu0 0.0
        %1687 = vmatprep.subr.mxu0 0.0
        %1688 = vmatpush1.msra.mxu0 0.0
        %1689 = vmatprep.subr.mxu0 0.0
        %1690 = vmatpush1.msra.mxu0 %v266
        %1691 = vmatprep.subr.mxu0 0.0
        %1692 = vmatpush1.msra.mxu0 %v265
        %1693 = vmatprep.subr.mxu0 0.0
        %1694 = vmatpush1.msra.mxu0 %v264
        %1695 = vmatprep.subr.mxu0 0.0
        %1696 = vmatpush1.msra.mxu0 %v263
        %1697 = vmatprep.subr.mxu0 0.0
        %1698 = vmatpush2.msra.mxu0 0.0
        %1699 = vmatprep.subr.mxu0 0.0
        %1700 = vmatpush2.msra.mxu0 0.0
        %1701 = vmatprep.subr.mxu0 0.0
        %1702 = vmatpush2.msra.mxu0 0.0
        %1703 = vmatprep.subr.mxu0 0.0
        %1704 = vmatpush2.msra.mxu0 0.0
        %1705 = vmatprep.subr.mxu0 0.0
        %1706 = vmatpush2.msra.mxu0 0.0
        %1707 = vmatprep.subr.mxu0 0.0
        %1708 = vmatpush2.msra.mxu0 0.0
        %1709 = vmatprep.subr.mxu0 0.0
        %1710 = vmatpush2.msra.mxu0 0.0
        %1711 = vmatprep.subr.mxu0 0.0
        %1712 = vmatpush2.msra.mxu0 0.0
        %1713 = vmatprep.subr.mxu0 0.0
        %1714 = vmatpush2.msra.mxu0 0.0
        %1715 = vmatprep.subr.mxu0 0.0
        %1716 = vmatpush2.msra.mxu0 0.0
        %1717 = vmatprep.subr.mxu0 0.0
        %1718 = vmatpush2.msra.mxu0 0.0
        %1719 = vmatprep.subr.mxu0 0.0
        %1720 = vmatpush2.msra.mxu0 0.0
        %1721 = vmatprep.subr.mxu0 0.0
        %1722 = vmatpush2.msra.mxu0 0.0
        %1723 = vmatprep.subr.mxu0 0.0
        %1724 = vmatpush2.msra.mxu0 0.0
        %1725 = vmatprep.subr.mxu0 0.0
        %1726 = vmatpush2.msra.mxu0 0.0
        %1727 = vmatprep.subr.mxu0 0.0
        %1728 = vmatpush2.msra.mxu0 0.0
        %1729 = vmatprep.mubr.f32.mxu0 0.0
        %1730 = vmatmul.mubr.f32.gmra.mxu0 %v1494
        %v1731 = vpop.f32.mrf.mxu0
        %v1732 = vadd.f32 0.0, %v1731
        %v1733 = vpop.f32.mrf.mxu0
        %1734 = vdwg.mxu0
        %1735 = vmax.xlane.f32.xlu0 %v1663
        %v1736 = vpop.xlane.xlu0 %1735
        %v1737 = vsub.f32 %v1663, %v1736
        %v1738 = vmul.f32 %v1737, 1.442695
        %v1739 = vpow.pop %v1738
        %1740 = vadd.xlane.f32.xlu0 %v1739
        %v1741 = vpop.xlane.xlu0 %1740
        %1742 = vmatprep.subr.mxu0 0.0
        %1743 = vmatpush1.msra.mxu0 %v1475
        %1744 = vmatprep.subr.mxu0 0.0
        %1745 = vmatpush1.msra.mxu0 %v1474
        %1746 = vmatprep.subr.mxu0 0.0
        %1747 = vmatpush1.msra.mxu0 %v1473
        %1748 = vmatprep.subr.mxu0 0.0
        %1749 = vmatpush1.msra.mxu0 %v1472
        %1750 = vmatprep.subr.mxu0 0.0
        %1751 = vmatpush1.msra.mxu0 %v1471
        %1752 = vmatprep.subr.mxu0 0.0
        %1753 = vmatpush1.msra.mxu0 %v1470
        %1754 = vmatprep.subr.mxu0 0.0
        %1755 = vmatpush1.msra.mxu0 %v1469
        %1756 = vmatprep.subr.mxu0 0.0
        %1757 = vmatpush1.msra.mxu0 %v1468
        %1758 = vmatprep.subr.mxu0 0.0
        %1759 = vmatpush1.msra.mxu0 %v1467
        %1760 = vmatprep.subr.mxu0 0.0
        %1761 = vmatpush1.msra.mxu0 %v1466
        %1762 = vmatprep.subr.mxu0 0.0
        %1763 = vmatpush1.msra.mxu0 %v1465
        %1764 = vmatprep.subr.mxu0 0.0
        %1765 = vmatpush1.msra.mxu0 %v1464
        %1766 = vmatprep.subr.mxu0 0.0
        %1767 = vmatpush1.msra.mxu0 %v1463
        %1768 = vmatprep.subr.mxu0 0.0
        %1769 = vmatpush1.msra.mxu0 %v1462
        %1770 = vmatprep.subr.mxu0 0.0
        %1771 = vmatpush1.msra.mxu0 %v1461
        %1772 = vmatprep.subr.mxu0 0.0
        %1773 = vmatpush1.msra.mxu0 %v1460
        %1774 = vmatprep.subr.mxu0 0.0
        %1775 = vmatpush2.msra.mxu0 0.0
        %1776 = vmatprep.subr.mxu0 0.0
        %1777 = vmatpush2.msra.mxu0 0.0
        %1778 = vmatprep.subr.mxu0 0.0
        %1779 = vmatpush2.msra.mxu0 0.0
        %1780 = vmatprep.subr.mxu0 0.0
        %1781 = vmatpush2.msra.mxu0 0.0
        %1782 = vmatprep.subr.mxu0 0.0
        %1783 = vmatpush2.msra.mxu0 0.0
        %1784 = vmatprep.subr.mxu0 0.0
        %1785 = vmatpush2.msra.mxu0 0.0
        %1786 = vmatprep.subr.mxu0 0.0
        %1787 = vmatpush2.msra.mxu0 0.0
        %1788 = vmatprep.subr.mxu0 0.0
        %1789 = vmatpush2.msra.mxu0 0.0
        %1790 = vmatprep.subr.mxu0 0.0
        %1791 = vmatpush2.msra.mxu0 0.0
        %1792 = vmatprep.subr.mxu0 0.0
        %1793 = vmatpush2.msra.mxu0 0.0
        %1794 = vmatprep.subr.mxu0 0.0
        %1795 = vmatpush2.msra.mxu0 0.0
        %1796 = vmatprep.subr.mxu0 0.0
        %1797 = vmatpush2.msra.mxu0 0.0
        %1798 = vmatprep.subr.mxu0 0.0
        %1799 = vmatpush2.msra.mxu0 0.0
        %1800 = vmatprep.subr.mxu0 0.0
        %1801 = vmatpush2.msra.mxu0 0.0
        %1802 = vmatprep.subr.mxu0 0.0
        %1803 = vmatpush2.msra.mxu0 0.0
        %1804 = vmatprep.subr.mxu0 0.0
        %1805 = vmatpush2.msra.mxu0 0.0
        %1806 = vmatprep.mubr.f32.mxu0 0.0
        %1807 = vmatmul.mubr.f32.gmra.mxu0 %v1739
        %v1808 = vpop.f32.mrf.mxu0
        %v1809 = vadd.f32 0.0, %v1808
        %v1810 = vpop.f32.mrf.mxu0
        %1811 = vdwg.mxu0
        %v1812 = vrcp.pop %v1741
        %v1813 = vmul.f32 %v1809, %v1812
        %v1814 = vmul.f32 %v1732, %v1813
        %v1815 = vsel %vm366, %v1814, 0.0
        %1816 = vadd.xlane.f32.xlu0 %v1815
        %v1817 = vpop.xlane.xlu0 %1816
        %1818 = vmax.xlane.f32.xlu0 %v1664
        %v1819 = vpop.xlane.xlu0 %1818
        %v1820 = vsub.f32 %v1664, %v1819
        %v1821 = vmul.f32 %v1820, 1.442695
        %v1822 = vpow.pop %v1821
        %1823 = vadd.xlane.f32.xlu0 %v1822
        %v1824 = vpop.xlane.xlu0 %1823
        %1825 = vmatprep.subr.mxu0 0.0
        %1826 = vmatpush1.msra.mxu0 %v1491
        %1827 = vmatprep.subr.mxu0 0.0
        %1828 = vmatpush1.msra.mxu0 %v1490
        %1829 = vmatprep.subr.mxu0 0.0
        %1830 = vmatpush1.msra.mxu0 %v1489
        %1831 = vmatprep.subr.mxu0 0.0
        %1832 = vmatpush1.msra.mxu0 %v1488
        %1833 = vmatprep.subr.mxu0 0.0
        %1834 = vmatpush1.msra.mxu0 %v1487
        %1835 = vmatprep.subr.mxu0 0.0
        %1836 = vmatpush1.msra.mxu0 %v1486
        %1837 = vmatprep.subr.mxu0 0.0
        %1838 = vmatpush1.msra.mxu0 %v1485
        %1839 = vmatprep.subr.mxu0 0.0
        %1840 = vmatpush1.msra.mxu0 %v1484
        %1841 = vmatprep.subr.mxu0 0.0
        %1842 = vmatpush1.msra.mxu0 %v1483
        %1843 = vmatprep.subr.mxu0 0.0
        %1844 = vmatpush1.msra.mxu0 %v1482
        %1845 = vmatprep.subr.mxu0 0.0
        %1846 = vmatpush1.msra.mxu0 %v1481
        %1847 = vmatprep.subr.mxu0 0.0
        %1848 = vmatpush1.msra.mxu0 %v1480
        %1849 = vmatprep.subr.mxu0 0.0
        %1850 = vmatpush1.msra.mxu0 %v1479
        %1851 = vmatprep.subr.mxu0 0.0
        %1852 = vmatpush1.msra.mxu0 %v1478
        %1853 = vmatprep.subr.mxu0 0.0
        %1854 = vmatpush1.msra.mxu0 %v1477
        %1855 = vmatprep.subr.mxu0 0.0
        %1856 = vmatpush1.msra.mxu0 %v1476
        %1857 = vmatprep.subr.mxu0 0.0
        %1858 = vmatpush2.msra.mxu0 0.0
        %1859 = vmatprep.subr.mxu0 0.0
        %1860 = vmatpush2.msra.mxu0 0.0
        %1861 = vmatprep.subr.mxu0 0.0
        %1862 = vmatpush2.msra.mxu0 0.0
        %1863 = vmatprep.subr.mxu0 0.0
        %1864 = vmatpush2.msra.mxu0 0.0
        %1865 = vmatprep.subr.mxu0 0.0
        %1866 = vmatpush2.msra.mxu0 0.0
        %1867 = vmatprep.subr.mxu0 0.0
        %1868 = vmatpush2.msra.mxu0 0.0
        %1869 = vmatprep.subr.mxu0 0.0
        %1870 = vmatpush2.msra.mxu0 0.0
        %1871 = vmatprep.subr.mxu0 0.0
        %1872 = vmatpush2.msra.mxu0 0.0
        %1873 = vmatprep.subr.mxu0 0.0
        %1874 = vmatpush2.msra.mxu0 0.0
        %1875 = vmatprep.subr.mxu0 0.0
        %1876 = vmatpush2.msra.mxu0 0.0
        %1877 = vmatprep.subr.mxu0 0.0
        %1878 = vmatpush2.msra.mxu0 0.0
        %1879 = vmatprep.subr.mxu0 0.0
        %1880 = vmatpush2.msra.mxu0 0.0
        %1881 = vmatprep.subr.mxu0 0.0
        %1882 = vmatpush2.msra.mxu0 0.0
        %1883 = vmatprep.subr.mxu0 0.0
        %1884 = vmatpush2.msra.mxu0 0.0
        %1885 = vmatprep.subr.mxu0 0.0
        %1886 = vmatpush2.msra.mxu0 0.0
        %1887 = vmatprep.subr.mxu0 0.0
        %1888 = vmatpush2.msra.mxu0 0.0
        %1889 = vmatprep.mubr.f32.mxu0 0.0
        %1890 = vmatmul.mubr.f32.gmra.mxu0 %v1822
        %v1891 = vpop.f32.mrf.mxu0
        %v1892 = vadd.f32 0.0, %v1891
        %v1893 = vpop.f32.mrf.mxu0
        %1894 = vdwg.mxu0
        %v1895 = vrcp.pop %v1824
        %v1896 = vmul.f32 %v1892, %v1895
        %v1897 = vmul.f32 %v1732, %v1896
        %v1898 = vsel %vm366, %v1897, 0.0
        %1899 = vadd.xlane.f32.xlu0 %v1898
        %v1900 = vpop.xlane.xlu0 %1899
        %v1901 = vmax.f32 %v1817, %v1900
        %v1902 = vsub.f32 %v1817, %v1901
        %v1903 = vmul.f32 %v1902, 1.442695
        %v1904 = vpow.pop %v1903
        %v1905 = vsub.f32 %v1900, %v1901
        %v1906 = vmul.f32 %v1905, 1.442695
        %v1907 = vpow.pop %v1906
        %v1908 = vadd.f32 %v1904, %v1907
        %v1909 = vmul.f32 %v1904, %v1813
        %v1910 = vmul.f32 %v1907, %v1896
        %v1911 = vadd.f32 %v1909, %v1910
        %v1912 = vrcp.pop %v1908
        %v1913 = vmul.f32 %v1911, %v1912
        %v1915 = vsel %vm366, %v1913, 0
        %1917 = vmatprep.subr.mxu0 0.0
        %1918 = vmatpush1.msra.mxu0 0.0
        %1919 = vmatprep.subr.mxu0 0.0
        %1920 = vmatpush1.msra.mxu0 0.0
        %1921 = vmatprep.subr.mxu0 0.0
        %1922 = vmatpush1.msra.mxu0 0.0
        %1923 = vmatprep.subr.mxu0 0.0
        %1924 = vmatpush1.msra.mxu0 0.0
        %1925 = vmatprep.subr.mxu0 0.0
        %1926 = vmatpush1.msra.mxu0 0.0
        %1927 = vmatprep.subr.mxu0 0.0
        %1928 = vmatpush1.msra.mxu0 0.0
        %1929 = vmatprep.subr.mxu0 0.0
        %1930 = vmatpush1.msra.mxu0 0.0
        %1931 = vmatprep.subr.mxu0 0.0
        %1932 = vmatpush1.msra.mxu0 0.0
        %1933 = vmatprep.subr.mxu0 0.0
        %1934 = vmatpush1.msra.mxu0 0.0
        %1935 = vmatprep.subr.mxu0 0.0
        %1936 = vmatpush1.msra.mxu0 0.0
        %1937 = vmatprep.subr.mxu0 0.0
        %1938 = vmatpush1.msra.mxu0 0.0
        %1939 = vmatprep.subr.mxu0 0.0
        %1940 = vmatpush1.msra.mxu0 0.0
        %1941 = vmatprep.subr.mxu0 0.0
        %1942 = vmatpush1.msra.mxu0 %v270
        %1943 = vmatprep.subr.mxu0 0.0
        %1944 = vmatpush1.msra.mxu0 %v269
        %1945 = vmatprep.subr.mxu0 0.0
        %1946 = vmatpush1.msra.mxu0 %v268
        %1947 = vmatprep.subr.mxu0 0.0
        %1948 = vmatpush1.msra.mxu0 %v267
        %1949 = vmatprep.subr.mxu0 0.0
        %1950 = vmatpush2.msra.mxu0 0.0
        %1951 = vmatprep.subr.mxu0 0.0
        %1952 = vmatpush2.msra.mxu0 0.0
        %1953 = vmatprep.subr.mxu0 0.0
        %1954 = vmatpush2.msra.mxu0 0.0
        %1955 = vmatprep.subr.mxu0 0.0
        %1956 = vmatpush2.msra.mxu0 0.0
        %1957 = vmatprep.subr.mxu0 0.0
        %1958 = vmatpush2.msra.mxu0 0.0
        %1959 = vmatprep.subr.mxu0 0.0
        %1960 = vmatpush2.msra.mxu0 0.0
        %1961 = vmatprep.subr.mxu0 0.0
        %1962 = vmatpush2.msra.mxu0 0.0
        %1963 = vmatprep.subr.mxu0 0.0
        %1964 = vmatpush2.msra.mxu0 0.0
        %1965 = vmatprep.subr.mxu0 0.0
        %1966 = vmatpush2.msra.mxu0 0.0
        %1967 = vmatprep.subr.mxu0 0.0
        %1968 = vmatpush2.msra.mxu0 0.0
        %1969 = vmatprep.subr.mxu0 0.0
        %1970 = vmatpush2.msra.mxu0 0.0
        %1971 = vmatprep.subr.mxu0 0.0
        %1972 = vmatpush2.msra.mxu0 0.0
        %1973 = vmatprep.subr.mxu0 0.0
        %1974 = vmatpush2.msra.mxu0 0.0
        %1975 = vmatprep.subr.mxu0 0.0
        %1976 = vmatpush2.msra.mxu0 0.0
        %1977 = vmatprep.subr.mxu0 0.0
        %1978 = vmatpush2.msra.mxu0 0.0
        %1979 = vmatprep.subr.mxu0 0.0
        %1980 = vmatpush2.msra.mxu0 0.0
        %1981 = vmatprep.mubr.f32.mxu0 0.0
        %1982 = vmatmul.mubr.f32.gmra.mxu0 %v1915
        %v1983 = vpop.f32.mrf.mxu0
        %v1984 = vadd.f32 0.0, %v1983
        %v1985 = vpop.f32.mrf.mxu0
        %1986 = vdwg.mxu0
        %s1987 = scalar_lea.vmem %s252, 24
        %v1988 = vld [vmem:[%s1987] sm:$0xff]
        %s1989 = scalar_lea.vmem %s257, 768
        %v1990 = vld [vmem:[%s1989] sm:$0xff]
        %v1991 = vld [vmem:[%s1989 + $0x8] sm:$0xff]
        %v1992 = vld [vmem:[%s1989 + $0x10] sm:$0xff]
        %v1993 = vld [vmem:[%s1989 + $0x18] sm:$0xff]
        %v1994 = vld [vmem:[%s1989 + $0x20] sm:$0xff]
        %v1995 = vld [vmem:[%s1989 + $0x28] sm:$0xff]
        %v1996 = vld [vmem:[%s1989 + $0x30] sm:$0xff]
        %v1997 = vld [vmem:[%s1989 + $0x38] sm:$0xff]
        %v1998 = vld [vmem:[%s1989 + $0x40] sm:$0xff]
        %v1999 = vld [vmem:[%s1989 + $0x48] sm:$0xff]
        %v2000 = vld [vmem:[%s1989 + $0x50] sm:$0xff]
        %v2001 = vld [vmem:[%s1989 + $0x58] sm:$0xff]
        %v2002 = vld [vmem:[%s1989 + $0x60] sm:$0xff]
        %v2003 = vld [vmem:[%s1989 + $0x68] sm:$0xff]
        %v2004 = vld [vmem:[%s1989 + $0x70] sm:$0xff]
        %v2005 = vld [vmem:[%s1989 + $0x78] sm:$0xff]
        %v2006 = vld [vmem:[%s1989 + $0x80] sm:$0xff]
        %v2007 = vld [vmem:[%s1989 + $0x88] sm:$0xff]
        %v2008 = vld [vmem:[%s1989 + $0x90] sm:$0xff]
        %v2009 = vld [vmem:[%s1989 + $0x98] sm:$0xff]
        %v2010 = vld [vmem:[%s1989 + $0xa0] sm:$0xff]
        %v2011 = vld [vmem:[%s1989 + $0xa8] sm:$0xff]
        %v2012 = vld [vmem:[%s1989 + $0xb0] sm:$0xff]
        %v2013 = vld [vmem:[%s1989 + $0xb8] sm:$0xff]
        %v2014 = vld [vmem:[%s1989 + $0xc0] sm:$0xff]
        %v2015 = vld [vmem:[%s1989 + $0xc8] sm:$0xff]
        %v2016 = vld [vmem:[%s1989 + $0xd0] sm:$0xff]
        %v2017 = vld [vmem:[%s1989 + $0xd8] sm:$0xff]
        %v2018 = vld [vmem:[%s1989 + $0xe0] sm:$0xff]
        %v2019 = vld [vmem:[%s1989 + $0xe8] sm:$0xff]
        %v2020 = vld [vmem:[%s1989 + $0xf0] sm:$0xff]
        %v2021 = vld [vmem:[%s1989 + $0xf8] sm:$0xff]
        %s2022 = scalar_lea.vmem %s262, 768
        %v2023 = vld [vmem:[%s2022] sm:$0xff]
        %v2024 = vld [vmem:[%s2022 + $0x8] sm:$0xff]
        %v2025 = vld [vmem:[%s2022 + $0x10] sm:$0xff]
        %v2026 = vld [vmem:[%s2022 + $0x18] sm:$0xff]
        %v2027 = vld [vmem:[%s2022 + $0x20] sm:$0xff]
        %v2028 = vld [vmem:[%s2022 + $0x28] sm:$0xff]
        %v2029 = vld [vmem:[%s2022 + $0x30] sm:$0xff]
        %v2030 = vld [vmem:[%s2022 + $0x38] sm:$0xff]
        %v2031 = vld [vmem:[%s2022 + $0x40] sm:$0xff]
        %v2032 = vld [vmem:[%s2022 + $0x48] sm:$0xff]
        %v2033 = vld [vmem:[%s2022 + $0x50] sm:$0xff]
        %v2034 = vld [vmem:[%s2022 + $0x58] sm:$0xff]
        %v2035 = vld [vmem:[%s2022 + $0x60] sm:$0xff]
        %v2036 = vld [vmem:[%s2022 + $0x68] sm:$0xff]
        %v2037 = vld [vmem:[%s2022 + $0x70] sm:$0xff]
        %v2038 = vld [vmem:[%s2022 + $0x78] sm:$0xff]
        %v2039 = vld [vmem:[%s2022 + $0x80] sm:$0xff]
        %v2040 = vld [vmem:[%s2022 + $0x88] sm:$0xff]
        %v2041 = vld [vmem:[%s2022 + $0x90] sm:$0xff]
        %v2042 = vld [vmem:[%s2022 + $0x98] sm:$0xff]
        %v2043 = vld [vmem:[%s2022 + $0xa0] sm:$0xff]
        %v2044 = vld [vmem:[%s2022 + $0xa8] sm:$0xff]
        %v2045 = vld [vmem:[%s2022 + $0xb0] sm:$0xff]
        %v2046 = vld [vmem:[%s2022 + $0xb8] sm:$0xff]
        %v2047 = vld [vmem:[%s2022 + $0xc0] sm:$0xff]
        %v2048 = vld [vmem:[%s2022 + $0xc8] sm:$0xff]
        %v2049 = vld [vmem:[%s2022 + $0xd0] sm:$0xff]
        %v2050 = vld [vmem:[%s2022 + $0xd8] sm:$0xff]
        %v2051 = vld [vmem:[%s2022 + $0xe0] sm:$0xff]
        %v2052 = vld [vmem:[%s2022 + $0xe8] sm:$0xff]
        %v2053 = vld [vmem:[%s2022 + $0xf0] sm:$0xff]
        %v2054 = vld [vmem:[%s2022 + $0xf8] sm:$0xff]
        %v2055 = vmul.f32 %v1988, 0.17677669
        %v2057 = vsel %vm366, %v2055, 0
        %v2060 = vsel %vm366, %v1990, 0
        %v2063 = vsel %vm366, %v1991, 0
        %v2066 = vsel %vm366, %v1992, 0
        %v2069 = vsel %vm366, %v1993, 0
        %v2072 = vsel %vm366, %v1994, 0
        %v2075 = vsel %vm366, %v1995, 0
        %v2078 = vsel %vm366, %v1996, 0
        %v2081 = vsel %vm366, %v1997, 0
        %v2084 = vsel %vm366, %v1998, 0
        %v2087 = vsel %vm366, %v1999, 0
        %v2090 = vsel %vm366, %v2000, 0
        %v2093 = vsel %vm366, %v2001, 0
        %v2096 = vsel %vm366, %v2002, 0
        %v2099 = vsel %vm366, %v2003, 0
        %v2102 = vsel %vm366, %v2004, 0
        %v2105 = vsel %vm366, %v2005, 0
        %v2108 = vsel %vm366, %v2006, 0
        %v2111 = vsel %vm366, %v2007, 0
        %v2114 = vsel %vm366, %v2008, 0
        %v2117 = vsel %vm366, %v2009, 0
        %v2120 = vsel %vm366, %v2010, 0
        %v2123 = vsel %vm366, %v2011, 0
        %v2126 = vsel %vm366, %v2012, 0
        %v2129 = vsel %vm366, %v2013, 0
        %v2132 = vsel %vm366, %v2014, 0
        %v2135 = vsel %vm366, %v2015, 0
        %v2138 = vsel %vm366, %v2016, 0
        %v2141 = vsel %vm366, %v2017, 0
        %v2144 = vsel %vm366, %v2018, 0
        %v2147 = vsel %vm366, %v2019, 0
        %v2150 = vsel %vm366, %v2020, 0
        %v2153 = vsel %vm366, %v2021, 0
        %2155 = vmatprep.subr.mxu0 0.0
        %2156 = vmatpush1.xpose.msra.mxu0 %v2105
        %2157 = vmatprep.subr.mxu0 0.0
        %2158 = vmatpush1.xpose.msra.mxu0 %v2102
        %2159 = vmatprep.subr.mxu0 0.0
        %2160 = vmatpush1.xpose.msra.mxu0 %v2099
        %2161 = vmatprep.subr.mxu0 0.0
        %2162 = vmatpush1.xpose.msra.mxu0 %v2096
        %2163 = vmatprep.subr.mxu0 0.0
        %2164 = vmatpush1.xpose.msra.mxu0 %v2093
        %2165 = vmatprep.subr.mxu0 0.0
        %2166 = vmatpush1.xpose.msra.mxu0 %v2090
        %2167 = vmatprep.subr.mxu0 0.0
        %2168 = vmatpush1.xpose.msra.mxu0 %v2087
        %2169 = vmatprep.subr.mxu0 0.0
        %2170 = vmatpush1.xpose.msra.mxu0 %v2084
        %2171 = vmatprep.subr.mxu0 0.0
        %2172 = vmatpush1.xpose.msra.mxu0 %v2081
        %2173 = vmatprep.subr.mxu0 0.0
        %2174 = vmatpush1.xpose.msra.mxu0 %v2078
        %2175 = vmatprep.subr.mxu0 0.0
        %2176 = vmatpush1.xpose.msra.mxu0 %v2075
        %2177 = vmatprep.subr.mxu0 0.0
        %2178 = vmatpush1.xpose.msra.mxu0 %v2072
        %2179 = vmatprep.subr.mxu0 0.0
        %2180 = vmatpush1.xpose.msra.mxu0 %v2069
        %2181 = vmatprep.subr.mxu0 0.0
        %2182 = vmatpush1.xpose.msra.mxu0 %v2066
        %2183 = vmatprep.subr.mxu0 0.0
        %2184 = vmatpush1.xpose.msra.mxu0 %v2063
        %2185 = vmatprep.subr.mxu0 0.0
        %2186 = vmatpush1.xpose.msra.mxu0 %v2060
        %2187 = vmatprep.subr.mxu0 0.0
        %2188 = vmatpush2.xpose.msra.mxu0 %v2153
        %2189 = vmatprep.subr.mxu0 0.0
        %2190 = vmatpush2.xpose.msra.mxu0 %v2150
        %2191 = vmatprep.subr.mxu0 0.0
        %2192 = vmatpush2.xpose.msra.mxu0 %v2147
        %2193 = vmatprep.subr.mxu0 0.0
        %2194 = vmatpush2.xpose.msra.mxu0 %v2144
        %2195 = vmatprep.subr.mxu0 0.0
        %2196 = vmatpush2.xpose.msra.mxu0 %v2141
        %2197 = vmatprep.subr.mxu0 0.0
        %2198 = vmatpush2.xpose.msra.mxu0 %v2138
        %2199 = vmatprep.subr.mxu0 0.0
        %2200 = vmatpush2.xpose.msra.mxu0 %v2135
        %2201 = vmatprep.subr.mxu0 0.0
        %2202 = vmatpush2.xpose.msra.mxu0 %v2132
        %2203 = vmatprep.subr.mxu0 0.0
        %2204 = vmatpush2.xpose.msra.mxu0 %v2129
        %2205 = vmatprep.subr.mxu0 0.0
        %2206 = vmatpush2.xpose.msra.mxu0 %v2126
        %2207 = vmatprep.subr.mxu0 0.0
        %2208 = vmatpush2.xpose.msra.mxu0 %v2123
        %2209 = vmatprep.subr.mxu0 0.0
        %2210 = vmatpush2.xpose.msra.mxu0 %v2120
        %2211 = vmatprep.subr.mxu0 0.0
        %2212 = vmatpush2.xpose.msra.mxu0 %v2117
        %2213 = vmatprep.subr.mxu0 0.0
        %2214 = vmatpush2.xpose.msra.mxu0 %v2114
        %2215 = vmatprep.subr.mxu0 0.0
        %2216 = vmatpush2.xpose.msra.mxu0 %v2111
        %2217 = vmatprep.subr.mxu0 0.0
        %2218 = vmatpush2.xpose.msra.mxu0 %v2108
        %2219 = vmatprep.mubr.f32.mxu0 0.0
        %2220 = vmatmul.mubr.f32.gmra.mxu0 %v2057
        %v2221 = vpop.f32.mrf.mxu0
        %v2222 = vadd.f32 0.0, %v2221
        %v2223 = vpop.f32.mrf.mxu0
        %v2224 = vadd.f32 0.0, %v2223
        %2225 = vdwg.mxu0
        %v2226 = vsel %vm298, %v2222, -1e+30
        %v2227 = vsel %vm299, %v2224, -1e+30
        %2228 = vmatprep.subr.mxu0 0.0
        %2229 = vmatpush1.msra.mxu0 0.0
        %2230 = vmatprep.subr.mxu0 0.0
        %2231 = vmatpush1.msra.mxu0 0.0
        %2232 = vmatprep.subr.mxu0 0.0
        %2233 = vmatpush1.msra.mxu0 0.0
        %2234 = vmatprep.subr.mxu0 0.0
        %2235 = vmatpush1.msra.mxu0 0.0
        %2236 = vmatprep.subr.mxu0 0.0
        %2237 = vmatpush1.msra.mxu0 0.0
        %2238 = vmatprep.subr.mxu0 0.0
        %2239 = vmatpush1.msra.mxu0 0.0
        %2240 = vmatprep.subr.mxu0 0.0
        %2241 = vmatpush1.msra.mxu0 0.0
        %2242 = vmatprep.subr.mxu0 0.0
        %2243 = vmatpush1.msra.mxu0 0.0
        %2244 = vmatprep.subr.mxu0 0.0
        %2245 = vmatpush1.msra.mxu0 0.0
        %2246 = vmatprep.subr.mxu0 0.0
        %2247 = vmatpush1.msra.mxu0 0.0
        %2248 = vmatprep.subr.mxu0 0.0
        %2249 = vmatpush1.msra.mxu0 0.0
        %2250 = vmatprep.subr.mxu0 0.0
        %2251 = vmatpush1.msra.mxu0 0.0
        %2252 = vmatprep.subr.mxu0 0.0
        %2253 = vmatpush1.msra.mxu0 %v266
        %2254 = vmatprep.subr.mxu0 0.0
        %2255 = vmatpush1.msra.mxu0 %v265
        %2256 = vmatprep.subr.mxu0 0.0
        %2257 = vmatpush1.msra.mxu0 %v264
        %2258 = vmatprep.subr.mxu0 0.0
        %2259 = vmatpush1.msra.mxu0 %v263
        %2260 = vmatprep.subr.mxu0 0.0
        %2261 = vmatpush2.msra.mxu0 0.0
        %2262 = vmatprep.subr.mxu0 0.0
        %2263 = vmatpush2.msra.mxu0 0.0
        %2264 = vmatprep.subr.mxu0 0.0
        %2265 = vmatpush2.msra.mxu0 0.0
        %2266 = vmatprep.subr.mxu0 0.0
        %2267 = vmatpush2.msra.mxu0 0.0
        %2268 = vmatprep.subr.mxu0 0.0
        %2269 = vmatpush2.msra.mxu0 0.0
        %2270 = vmatprep.subr.mxu0 0.0
        %2271 = vmatpush2.msra.mxu0 0.0
        %2272 = vmatprep.subr.mxu0 0.0
        %2273 = vmatpush2.msra.mxu0 0.0
        %2274 = vmatprep.subr.mxu0 0.0
        %2275 = vmatpush2.msra.mxu0 0.0
        %2276 = vmatprep.subr.mxu0 0.0
        %2277 = vmatpush2.msra.mxu0 0.0
        %2278 = vmatprep.subr.mxu0 0.0
        %2279 = vmatpush2.msra.mxu0 0.0
        %2280 = vmatprep.subr.mxu0 0.0
        %2281 = vmatpush2.msra.mxu0 0.0
        %2282 = vmatprep.subr.mxu0 0.0
        %2283 = vmatpush2.msra.mxu0 0.0
        %2284 = vmatprep.subr.mxu0 0.0
        %2285 = vmatpush2.msra.mxu0 0.0
        %2286 = vmatprep.subr.mxu0 0.0
        %2287 = vmatpush2.msra.mxu0 0.0
        %2288 = vmatprep.subr.mxu0 0.0
        %2289 = vmatpush2.msra.mxu0 0.0
        %2290 = vmatprep.subr.mxu0 0.0
        %2291 = vmatpush2.msra.mxu0 0.0
        %2292 = vmatprep.mubr.f32.mxu0 0.0
        %2293 = vmatmul.mubr.f32.gmra.mxu0 %v2057
        %v2294 = vpop.f32.mrf.mxu0
        %v2295 = vadd.f32 0.0, %v2294
        %v2296 = vpop.f32.mrf.mxu0
        %2297 = vdwg.mxu0
        %2298 = vmax.xlane.f32.xlu0 %v2226
        %v2299 = vpop.xlane.xlu0 %2298
        %v2300 = vsub.f32 %v2226, %v2299
        %v2301 = vmul.f32 %v2300, 1.442695
        %v2302 = vpow.pop %v2301
        %2303 = vadd.xlane.f32.xlu0 %v2302
        %v2304 = vpop.xlane.xlu0 %2303
        %2305 = vmatprep.subr.mxu0 0.0
        %2306 = vmatpush1.msra.mxu0 %v2038
        %2307 = vmatprep.subr.mxu0 0.0
        %2308 = vmatpush1.msra.mxu0 %v2037
        %2309 = vmatprep.subr.mxu0 0.0
        %2310 = vmatpush1.msra.mxu0 %v2036
        %2311 = vmatprep.subr.mxu0 0.0
        %2312 = vmatpush1.msra.mxu0 %v2035
        %2313 = vmatprep.subr.mxu0 0.0
        %2314 = vmatpush1.msra.mxu0 %v2034
        %2315 = vmatprep.subr.mxu0 0.0
        %2316 = vmatpush1.msra.mxu0 %v2033
        %2317 = vmatprep.subr.mxu0 0.0
        %2318 = vmatpush1.msra.mxu0 %v2032
        %2319 = vmatprep.subr.mxu0 0.0
        %2320 = vmatpush1.msra.mxu0 %v2031
        %2321 = vmatprep.subr.mxu0 0.0
        %2322 = vmatpush1.msra.mxu0 %v2030
        %2323 = vmatprep.subr.mxu0 0.0
        %2324 = vmatpush1.msra.mxu0 %v2029
        %2325 = vmatprep.subr.mxu0 0.0
        %2326 = vmatpush1.msra.mxu0 %v2028
        %2327 = vmatprep.subr.mxu0 0.0
        %2328 = vmatpush1.msra.mxu0 %v2027
        %2329 = vmatprep.subr.mxu0 0.0
        %2330 = vmatpush1.msra.mxu0 %v2026
        %2331 = vmatprep.subr.mxu0 0.0
        %2332 = vmatpush1.msra.mxu0 %v2025
        %2333 = vmatprep.subr.mxu0 0.0
        %2334 = vmatpush1.msra.mxu0 %v2024
        %2335 = vmatprep.subr.mxu0 0.0
        %2336 = vmatpush1.msra.mxu0 %v2023
        %2337 = vmatprep.subr.mxu0 0.0
        %2338 = vmatpush2.msra.mxu0 0.0
        %2339 = vmatprep.subr.mxu0 0.0
        %2340 = vmatpush2.msra.mxu0 0.0
        %2341 = vmatprep.subr.mxu0 0.0
        %2342 = vmatpush2.msra.mxu0 0.0
        %2343 = vmatprep.subr.mxu0 0.0
        %2344 = vmatpush2.msra.mxu0 0.0
        %2345 = vmatprep.subr.mxu0 0.0
        %2346 = vmatpush2.msra.mxu0 0.0
        %2347 = vmatprep.subr.mxu0 0.0
        %2348 = vmatpush2.msra.mxu0 0.0
        %2349 = vmatprep.subr.mxu0 0.0
        %2350 = vmatpush2.msra.mxu0 0.0
        %2351 = vmatprep.subr.mxu0 0.0
        %2352 = vmatpush2.msra.mxu0 0.0
        %2353 = vmatprep.subr.mxu0 0.0
        %2354 = vmatpush2.msra.mxu0 0.0
        %2355 = vmatprep.subr.mxu0 0.0
        %2356 = vmatpush2.msra.mxu0 0.0
        %2357 = vmatprep.subr.mxu0 0.0
        %2358 = vmatpush2.msra.mxu0 0.0
        %2359 = vmatprep.subr.mxu0 0.0
        %2360 = vmatpush2.msra.mxu0 0.0
        %2361 = vmatprep.subr.mxu0 0.0
        %2362 = vmatpush2.msra.mxu0 0.0
        %2363 = vmatprep.subr.mxu0 0.0
        %2364 = vmatpush2.msra.mxu0 0.0
        %2365 = vmatprep.subr.mxu0 0.0
        %2366 = vmatpush2.msra.mxu0 0.0
        %2367 = vmatprep.subr.mxu0 0.0
        %2368 = vmatpush2.msra.mxu0 0.0
        %2369 = vmatprep.mubr.f32.mxu0 0.0
        %2370 = vmatmul.mubr.f32.gmra.mxu0 %v2302
        %v2371 = vpop.f32.mrf.mxu0
        %v2372 = vadd.f32 0.0, %v2371
        %v2373 = vpop.f32.mrf.mxu0
        %2374 = vdwg.mxu0
        %v2375 = vrcp.pop %v2304
        %v2376 = vmul.f32 %v2372, %v2375
        %v2377 = vmul.f32 %v2295, %v2376
        %v2378 = vsel %vm366, %v2377, 0.0
        %2379 = vadd.xlane.f32.xlu0 %v2378
        %v2380 = vpop.xlane.xlu0 %2379
        %2381 = vmax.xlane.f32.xlu0 %v2227
        %v2382 = vpop.xlane.xlu0 %2381
        %v2383 = vsub.f32 %v2227, %v2382
        %v2384 = vmul.f32 %v2383, 1.442695
        %v2385 = vpow.pop %v2384
        %2386 = vadd.xlane.f32.xlu0 %v2385
        %v2387 = vpop.xlane.xlu0 %2386
        %2388 = vmatprep.subr.mxu0 0.0
        %2389 = vmatpush1.msra.mxu0 %v2054
        %2390 = vmatprep.subr.mxu0 0.0
        %2391 = vmatpush1.msra.mxu0 %v2053
        %2392 = vmatprep.subr.mxu0 0.0
        %2393 = vmatpush1.msra.mxu0 %v2052
        %2394 = vmatprep.subr.mxu0 0.0
        %2395 = vmatpush1.msra.mxu0 %v2051
        %2396 = vmatprep.subr.mxu0 0.0
        %2397 = vmatpush1.msra.mxu0 %v2050
        %2398 = vmatprep.subr.mxu0 0.0
        %2399 = vmatpush1.msra.mxu0 %v2049
        %2400 = vmatprep.subr.mxu0 0.0
        %2401 = vmatpush1.msra.mxu0 %v2048
        %2402 = vmatprep.subr.mxu0 0.0
        %2403 = vmatpush1.msra.mxu0 %v2047
        %2404 = vmatprep.subr.mxu0 0.0
        %2405 = vmatpush1.msra.mxu0 %v2046
        %2406 = vmatprep.subr.mxu0 0.0
        %2407 = vmatpush1.msra.mxu0 %v2045
        %2408 = vmatprep.subr.mxu0 0.0
        %2409 = vmatpush1.msra.mxu0 %v2044
        %2410 = vmatprep.subr.mxu0 0.0
        %2411 = vmatpush1.msra.mxu0 %v2043
        %2412 = vmatprep.subr.mxu0 0.0
        %2413 = vmatpush1.msra.mxu0 %v2042
        %2414 = vmatprep.subr.mxu0 0.0
        %2415 = vmatpush1.msra.mxu0 %v2041
        %2416 = vmatprep.subr.mxu0 0.0
        %2417 = vmatpush1.msra.mxu0 %v2040
        %2418 = vmatprep.subr.mxu0 0.0
        %2419 = vmatpush1.msra.mxu0 %v2039
        %2420 = vmatprep.subr.mxu0 0.0
        %2421 = vmatpush2.msra.mxu0 0.0
        %2422 = vmatprep.subr.mxu0 0.0
        %2423 = vmatpush2.msra.mxu0 0.0
        %2424 = vmatprep.subr.mxu0 0.0
        %2425 = vmatpush2.msra.mxu0 0.0
        %2426 = vmatprep.subr.mxu0 0.0
        %2427 = vmatpush2.msra.mxu0 0.0
        %2428 = vmatprep.subr.mxu0 0.0
        %2429 = vmatpush2.msra.mxu0 0.0
        %2430 = vmatprep.subr.mxu0 0.0
        %2431 = vmatpush2.msra.mxu0 0.0
        %2432 = vmatprep.subr.mxu0 0.0
        %2433 = vmatpush2.msra.mxu0 0.0
        %2434 = vmatprep.subr.mxu0 0.0
        %2435 = vmatpush2.msra.mxu0 0.0
        %2436 = vmatprep.subr.mxu0 0.0
        %2437 = vmatpush2.msra.mxu0 0.0
        %2438 = vmatprep.subr.mxu0 0.0
        %2439 = vmatpush2.msra.mxu0 0.0
        %2440 = vmatprep.subr.mxu0 0.0
        %2441 = vmatpush2.msra.mxu0 0.0
        %2442 = vmatprep.subr.mxu0 0.0
        %2443 = vmatpush2.msra.mxu0 0.0
        %2444 = vmatprep.subr.mxu0 0.0
        %2445 = vmatpush2.msra.mxu0 0.0
        %2446 = vmatprep.subr.mxu0 0.0
        %2447 = vmatpush2.msra.mxu0 0.0
        %2448 = vmatprep.subr.mxu0 0.0
        %2449 = vmatpush2.msra.mxu0 0.0
        %2450 = vmatprep.subr.mxu0 0.0
        %2451 = vmatpush2.msra.mxu0 0.0
        %2452 = vmatprep.mubr.f32.mxu0 0.0
        %2453 = vmatmul.mubr.f32.gmra.mxu0 %v2385
        %v2454 = vpop.f32.mrf.mxu0
        %v2455 = vadd.f32 0.0, %v2454
        %v2456 = vpop.f32.mrf.mxu0
        %2457 = vdwg.mxu0
        %v2458 = vrcp.pop %v2387
        %v2459 = vmul.f32 %v2455, %v2458
        %v2460 = vmul.f32 %v2295, %v2459
        %v2461 = vsel %vm366, %v2460, 0.0
        %2462 = vadd.xlane.f32.xlu0 %v2461
        %v2463 = vpop.xlane.xlu0 %2462
        %v2464 = vmax.f32 %v2380, %v2463
        %v2465 = vsub.f32 %v2380, %v2464
        %v2466 = vmul.f32 %v2465, 1.442695
        %v2467 = vpow.pop %v2466
        %v2468 = vsub.f32 %v2463, %v2464
        %v2469 = vmul.f32 %v2468, 1.442695
        %v2470 = vpow.pop %v2469
        %v2471 = vadd.f32 %v2467, %v2470
        %v2472 = vmul.f32 %v2467, %v2376
        %v2473 = vmul.f32 %v2470, %v2459
        %v2474 = vadd.f32 %v2472, %v2473
        %v2475 = vrcp.pop %v2471
        %v2476 = vmul.f32 %v2474, %v2475
        %v2478 = vsel %vm366, %v2476, 0
        %2480 = vmatprep.subr.mxu0 0.0
        %2481 = vmatpush1.msra.mxu0 0.0
        %2482 = vmatprep.subr.mxu0 0.0
        %2483 = vmatpush1.msra.mxu0 0.0
        %2484 = vmatprep.subr.mxu0 0.0
        %2485 = vmatpush1.msra.mxu0 0.0
        %2486 = vmatprep.subr.mxu0 0.0
        %2487 = vmatpush1.msra.mxu0 0.0
        %2488 = vmatprep.subr.mxu0 0.0
        %2489 = vmatpush1.msra.mxu0 0.0
        %2490 = vmatprep.subr.mxu0 0.0
        %2491 = vmatpush1.msra.mxu0 0.0
        %2492 = vmatprep.subr.mxu0 0.0
        %2493 = vmatpush1.msra.mxu0 0.0
        %2494 = vmatprep.subr.mxu0 0.0
        %2495 = vmatpush1.msra.mxu0 0.0
        %2496 = vmatprep.subr.mxu0 0.0
        %2497 = vmatpush1.msra.mxu0 0.0
        %2498 = vmatprep.subr.mxu0 0.0
        %2499 = vmatpush1.msra.mxu0 0.0
        %2500 = vmatprep.subr.mxu0 0.0
        %2501 = vmatpush1.msra.mxu0 0.0
        %2502 = vmatprep.subr.mxu0 0.0
        %2503 = vmatpush1.msra.mxu0 0.0
        %2504 = vmatprep.subr.mxu0 0.0
        %2505 = vmatpush1.msra.mxu0 %v270
        %2506 = vmatprep.subr.mxu0 0.0
        %2507 = vmatpush1.msra.mxu0 %v269
        %2508 = vmatprep.subr.mxu0 0.0
        %2509 = vmatpush1.msra.mxu0 %v268
        %2510 = vmatprep.subr.mxu0 0.0
        %2511 = vmatpush1.msra.mxu0 %v267
        %2512 = vmatprep.subr.mxu0 0.0
        %2513 = vmatpush2.msra.mxu0 0.0
        %2514 = vmatprep.subr.mxu0 0.0
        %2515 = vmatpush2.msra.mxu0 0.0
        %2516 = vmatprep.subr.mxu0 0.0
        %2517 = vmatpush2.msra.mxu0 0.0
        %2518 = vmatprep.subr.mxu0 0.0
        %2519 = vmatpush2.msra.mxu0 0.0
        %2520 = vmatprep.subr.mxu0 0.0
        %2521 = vmatpush2.msra.mxu0 0.0
        %2522 = vmatprep.subr.mxu0 0.0
        %2523 = vmatpush2.msra.mxu0 0.0
        %2524 = vmatprep.subr.mxu0 0.0
        %2525 = vmatpush2.msra.mxu0 0.0
        %2526 = vmatprep.subr.mxu0 0.0
        %2527 = vmatpush2.msra.mxu0 0.0
        %2528 = vmatprep.subr.mxu0 0.0
        %2529 = vmatpush2.msra.mxu0 0.0
        %2530 = vmatprep.subr.mxu0 0.0
        %2531 = vmatpush2.msra.mxu0 0.0
        %2532 = vmatprep.subr.mxu0 0.0
        %2533 = vmatpush2.msra.mxu0 0.0
        %2534 = vmatprep.subr.mxu0 0.0
        %2535 = vmatpush2.msra.mxu0 0.0
        %2536 = vmatprep.subr.mxu0 0.0
        %2537 = vmatpush2.msra.mxu0 0.0
        %2538 = vmatprep.subr.mxu0 0.0
        %2539 = vmatpush2.msra.mxu0 0.0
        %2540 = vmatprep.subr.mxu0 0.0
        %2541 = vmatpush2.msra.mxu0 0.0
        %2542 = vmatprep.subr.mxu0 0.0
        %2543 = vmatpush2.msra.mxu0 0.0
        %2544 = vmatprep.mubr.f32.mxu0 0.0
        %2545 = vmatmul.mubr.f32.gmra.mxu0 %v2478
        %v2546 = vpop.f32.mrf.mxu0
        %v2547 = vadd.f32 0.0, %v2546
        %v2548 = vpop.f32.mrf.mxu0
        %2549 = vdwg.mxu0
        %2551 = vrot.lane.b32.xlu0 %v1421, 32
        %v2552 = vpop.permute.xlu0 %2551
        %2555 = vrot.lane.b32.xlu0 %v1984, 64
        %v2556 = vpop.permute.xlu0 %2555
        %2559 = vrot.lane.b32.xlu0 %v2547, 96
        %v2560 = vpop.permute.xlu0 %2559
        %v2562 = vsel %vm366, %v858, %v2552
        %vm2563 = vcmask 523264
        %v2564 = vsel %vm2563, %v2562, %v2556
        %vm2565 = vcmask 785408
        %v2566 = vsel %vm2565, %v2564, %v2560
        %2567 = vst [vmem:[%s247] sm:$0xff] %v2566
        %s2568 = sand.u32 %s147, 1
        %s2569 = scalar_lea.sflag [#allocation3], %s2568
        %s2570 = sand.u32 %s147, 1
        %s2571 = smul.addr %s2570, 8
        %s2572 = scalar_lea.vmem [#allocation2], %s2571
        // Predicated region
        $region41: #{tpu_custom_call.1} parent=39 // pred_check
          %p2573 = pneg %p157
        $region42: #{tpu_custom_call.1} parent=39 // pred_check_branch
          %2575 = sbr.rel (%p2573) target = $region44
        $region43: #{tpu_custom_call.1} parent=39 // pred_region
          %s2577 = ssub.s32 128, 128
          %2578 = vsyncadd %s2569, %s2577
          %s2579 = smul.addr %s19, 128
          %s2580 = scalar_lea.hbm %s5, %s2579
          %s2582 = sshll.u32 %s2572, 4
          %s2583 = int_to_ptr.vmem [resolvable:$true] %s2582
          %2585 = dma.vmem_to_hbm [thread:$0]  %s2583, 128, %s2580, %s2569
        $region44: #{tpu_custom_call.1} parent=39 // pred_fallthru
          _
      $region40: #{tpu_custom_call.1} parent=5 // pred_fallthru
        _
      %p2586 = scmp.le.s32.totalorder 2, %s14
      // Predicated region
      $region45: #{tpu_custom_call.1} parent=5 // pred_check
        %p2587 = pneg %p2586
      $region46: #{tpu_custom_call.1} parent=5 // pred_check_branch
        %2589 = sbr.rel (%p2587) target = $region48
      $region47: #{tpu_custom_call.1} parent=5 // pred_region
        %s2590 = ssub.s32 %s14, 2
        // Predicated region
        $region49: #{tpu_custom_call.1} parent=47 // pred_check
          %p2591 = pneg %p163
        $region50: #{tpu_custom_call.1} parent=47 // pred_check_branch
          %2593 = sbr.rel (%p2591) target = $region52
        $region51: #{tpu_custom_call.1} parent=47 // pred_region
          %s2594 = sand.u32 %s148, 1
          %s2595 = scalar_lea.sflag [#allocation3], %s2594
          %s2596 = sand.u32 %s148, 1
          %s2597 = smul.addr %s2596, 8
          %s2598 = scalar_lea.vmem [#allocation2], %s2597
          %2599 = dma.done %s2595, 128
        $region52: #{tpu_custom_call.1} parent=47 // pred_fallthru
          _
      $region48: #{tpu_custom_call.1} parent=5 // pred_fallthru
        _
    $region6: #{tpu_custom_call.1} parent=1 // loop_footer
      %s18 = sadd.s32 1, %s14
    $region7: #{tpu_custom_call.1} parent=1 // loop_footer_branch
      %13 = sbr.rel target = $region3
    $region8: #{tpu_custom_call.1} parent=1 // loop_exit
      _
    %2600 = vsyncpa [#allocation3], 1
    %s2601 = scalar_lea.sflag [#allocation3], 1
    %2602 = vsyncpa %s2601, 1

</llo_original>
